<compile_context>
chip_gen: v6e
topology: v6e:2x2x1
jax: 0.10.0
libtpu: 0.0.40
codegen_flags: <defaults>
</compile_context>

<pallas_src>
import jax
import jax.numpy as jnp
from jax import lax
from jax.experimental import pallas as pl
from jax.experimental.pallas import tpu as pltpu

# SELU constants (match torch.nn.SELU)
_SELU_ALPHA = 1.6732632423543772
_SELU_SCALE = 1.0507009873554805


def _selu(x):
    # Select (not multiply) so exp() overflow on the positive branch is masked.
    return _SELU_SCALE * jnp.where(x > 0, x, _SELU_ALPHA * (jnp.exp(x) - 1.0))


def _make_kernel(n_hidden: int, n_out: int):
    """Kernel for `n_hidden` (Linear+SELU) layers followed by a final Linear.

    Ref order (after x_ref): w_1, b_1, ..., w_h, b_h, w_out, b_out, o_ref
      hidden w_i : (U_i, F_prev)   torch (out, in) layout, compute dtype
      hidden b_i : (U_i, 1)        float32
      w_out      : (U_prev, 1) if (n_hidden > 0 and n_out == 1) else (n_out, F_prev)
      b_out      : (n_out, 1)      float32
      o_ref      : (n_out, tm)     float32, sample axis on lanes
    """
    reduce_out = n_hidden > 0 and n_out == 1

    def kernel(x_ref, *refs):
        o_ref = refs[-1]
        prefs = refs[:-1]
        cdt = prefs[0].dtype            # MXU input dtype (weights' dtype)

        h = x_ref[...].astype(cdt)      # (tm, F)
        transposed = False              # is `h` laid out (units, tm)?
        k = 0
        for _ in range(n_hidden):
            w = prefs[k][...]
            b = prefs[k + 1][...]
            k += 2
            if not transposed:
                # (U, F) . (tm, F)^T -> (U, tm): sample axis moves onto lanes.
                h = lax.dot_general(w, h, (((1,), (1,)), ((), ())),
                                    preferred_element_type=jnp.float32)
                transposed = True
            else:
                h = jnp.dot(w, h.astype(cdt), preferred_element_type=jnp.float32)
            h = _selu(h + b)            # float32, (U, tm), lane-dense

        w_out = prefs[k][...]
        b_out = prefs[k + 1][...]
        if reduce_out:
            # Linear(U -> 1): VPU multiply + sublane reduce (no width-1 MXU matmul).
            out = jnp.sum(h * w_out.astype(jnp.float32), axis=0, keepdims=True) + b_out
        elif not transposed:
            # No hidden layers: single Linear, still computed transposed.
            out = lax.dot_general(w_out, h, (((1,), (1,)), ((), ())),
                                  preferred_element_type=jnp.float32) + b_out
        else:
            out = jnp.dot(w_out, h.astype(cdt),
                          preferred_element_type=jnp.float32) + b_out
        o_ref[...] = out.astype(o_ref.dtype)

    return kernel


def output_network(x, params, *, tm=4096, compute_dtype=None):
    """Apply the DeepRC output network. x: (N, F) -> (N, n_output_features).

    params: [(w, b), ...] in torch nn.Linear layout (w: (out, in), b: (out,)).
            All layers except the last are followed by SELU.
    tm:     rows of x per grid step (multiple of 128). The kernel is
            HBM-bandwidth bound, so prefer 2048-8192 for large N.
    compute_dtype: dtype fed to the MXU (default x.dtype). Pass x already in
            bfloat16 to halve HBM traffic; accumulation/SELU stay float32.
    """
    N, F = x.shape
    n_hidden = len(params) - 1
    w_last, b_last = params[-1]
    n_out = w_last.shape[0]
    if compute_dtype is None:
        compute_dtype = x.dtype if jnp.issubdtype(x.dtype, jnp.floating) else jnp.float32
    compute_dtype = jnp.dtype(compute_dtype)

    assert tm % 128 == 0, "tm must be a multiple of 128"
    tm = min(tm, ((N + 127) // 128) * 128)       # don't over-pad small inputs
    n_pad = ((N + tm - 1) // tm) * tm
    if n_pad != N:
        x = jnp.pad(x, ((0, n_pad - N), (0, 0)))
    grid = (n_pad // tm,)

    reduce_out = n_hidden > 0 and n_out == 1
    const_map = lambda i: (0, 0)                 # weights: fetched once, kept resident

    args = [x]
    in_specs = [pl.BlockSpec((tm, F), lambda i: (i, 0))]
    for w, b in params[:-1]:
        args.append(w.astype(compute_dtype))                     # (U, F_prev)
        in_specs.append(pl.BlockSpec(w.shape, const_map))
        args.append(b.reshape(-1, 1).astype(jnp.float32))        # (U, 1)
        in_specs.append(pl.BlockSpec((w.shape[0], 1), const_map))
    w_out = (w_last.T if reduce_out else w_last).astype(compute_dtype)
    args.append(w_out)
    in_specs.append(pl.BlockSpec(w_out.shape, const_map))
    args.append(b_last.reshape(-1, 1).astype(jnp.float32))       # (n_out, 1)
    in_specs.append(pl.BlockSpec((n_out, 1), const_map))

    out3 = pl.pallas_call(
        _make_kernel(n_hidden, n_out),
        out_shape=jax.ShapeDtypeStruct((grid[0], n_out, tm), jnp.float32),
        grid_spec=pltpu.PrefetchScalarGridSpec(
            num_scalar_prefetch=0,
            grid=grid,
            in_specs=in_specs,
            out_specs=pl.BlockSpec((None, n_out, tm), lambda i: (i, 0, 0)),
        ),
        compiler_params=pltpu.CompilerParams(
            dimension_semantics=("parallel",),
            vmem_limit_bytes=48 * 1024 * 1024,
        ),
    )(*args)

    # (G, n_out, tm): lane axis holds consecutive sample rows of each tile.
    return out3.transpose(0, 2, 1).reshape(n_pad, n_out)[:N]


def init_params(key, n_input_features, n_output_features=1, n_layers=1, n_units=32):
    """Deterministic init mirroring OutputNetwork.__init__ (torch layouts).

    weights ~ N(0, sqrt(1 / prod(w.shape))); biases use nn.Linear's default
    U(-1/sqrt(fan_in), 1/sqrt(fan_in)).  Returns [(w, b), ...], w: (out, in).
    """
    params = []
    fan_in = n_input_features
    keys = jax.random.split(key, 2 * n_layers)
    for layer in range(n_layers):
        fan_out = n_units if layer < n_layers - 1 else n_output_features
        std = (1.0 / (fan_out * fan_in)) ** 0.5
        w = std * jax.random.normal(keys[2 * layer], (fan_out, fan_in), jnp.float32)
        bound = 1.0 / fan_in ** 0.5
        b = bound * (2.0 * jax.random.uniform(keys[2 * layer + 1], (fan_out,),
                                              jnp.float32) - 1.0)
        params.append((w, b))
        fan_in = fan_out
    return params


def output_network_ref(x, params):
    """Pure-JAX float32 reference (mirrors the torch forward)."""
    h = x.astype(jnp.float32)
    for w, b in params[:-1]:
        h = _selu(jnp.dot(h, w.astype(jnp.float32).T,
                          precision=lax.Precision.HIGHEST) + b.astype(jnp.float32))
    w, b = params[-1]
    return jnp.dot(h, w.astype(jnp.float32).T,
                   precision=lax.Precision.HIGHEST) + b.astype(jnp.float32)


if __name__ == "__main__":
    key = jax.random.PRNGKey(0)
    k_x, k_p = jax.random.split(key)

    # OutputNetwork(n_input_features=64, n_output_features=1, n_layers=3, n_units=32):
    #   Linear(64->32)+SELU -> Linear(32->32)+SELU -> Linear(32->1)
    # n_samples deliberately not a multiple of the row tile (exercises padding).
    n_samples = 2500
    n_input_features = 64
    n_units = 32
    n_layers = 3
    n_output_features = 1

    x = jax.random.normal(k_x, (n_samples, n_input_features), jnp.float32)
    params = init_params(k_p, n_input_features, n_output_features, n_layers, n_units)
    ref = output_network_ref(x, params)

    # float32 path, small tile -> multi-step grid + tail padding.
    out = jax.block_until_ready(output_network(x, params, tm=1024))
    assert out.shape == (n_samples, n_output_features), out.shape
    err = float(jnp.max(jnp.abs(out - ref)))
    assert err < 2e-4, f"float32 max abs err {err}"

    # bfloat16 streaming path (halves HBM traffic for x); default (clamped) tile.
    out_bf16 = jax.block_until_ready(output_network(x.astype(jnp.bfloat16), params))
    err_bf16 = float(jnp.max(jnp.abs(out_bf16 - ref)))
    assert err_bf16 < 5e-2, f"bfloat16 max abs err {err_bf16}"

    print("KERNEL_OK")
</pallas_src>

<mosaic_0001>
module attributes {stable_mosaic.version = 11 : i64} {
  func.func @kernel(%arg0: i32, %arg1: memref<1024x64xf32, #tpu.memory_space<vmem>>, %arg2: memref<32x64xf32, #tpu.memory_space<vmem>>, %arg3: memref<32x1xf32, #tpu.memory_space<vmem>>, %arg4: memref<32x32xf32, #tpu.memory_space<vmem>>, %arg5: memref<32x1xf32, #tpu.memory_space<vmem>>, %arg6: memref<32x1xf32, #tpu.memory_space<vmem>>, %arg7: memref<1x1xf32, #tpu.memory_space<vmem>>, %arg8: memref<1x1x1024xf32, #tpu.memory_space<vmem>>) attributes {dimension_semantics = [#tpu.dimension_semantics<parallel>], iteration_bounds = array<i64: 3>, scalar_prefetch = 0 : i64, scratch_operands = 0 : i64, tpu.core_type = #tpu.core_type<tc>, window_params = [{transform_indices = @transform_0, window_bounds = array<i64: 1024, 64>}, {pipeline_mode = #tpu.pipeline_mode<synchronous>, transform_indices = @transform_1, window_bounds = array<i64: 32, 64>}, {pipeline_mode = #tpu.pipeline_mode<synchronous>, transform_indices = @transform_2, window_bounds = array<i64: 32, 1>}, {pipeline_mode = #tpu.pipeline_mode<synchronous>, transform_indices = @transform_3, window_bounds = array<i64: 32, 32>}, {pipeline_mode = #tpu.pipeline_mode<synchronous>, transform_indices = @transform_4, window_bounds = array<i64: 32, 1>}, {pipeline_mode = #tpu.pipeline_mode<synchronous>, transform_indices = @transform_5, window_bounds = array<i64: 32, 1>}, {pipeline_mode = #tpu.pipeline_mode<synchronous>, transform_indices = @transform_6, window_bounds = array<i64: 1, 1>}, {transform_indices = @transform_7, window_bounds = array<i64: 1, 1, 1024>}]} {
    %c0 = arith.constant 0 : index
    %c0_0 = arith.constant 0 : index
    %0 = vector.load %arg1[%c0, %c0_0] : memref<1024x64xf32, #tpu.memory_space<vmem>>, vector<1024x64xf32>
    %c0_1 = arith.constant 0 : index
    %c0_2 = arith.constant 0 : index
    %1 = vector.load %arg2[%c0_1, %c0_2] : memref<32x64xf32, #tpu.memory_space<vmem>>, vector<32x64xf32>
    %c0_3 = arith.constant 0 : index
    %c0_4 = arith.constant 0 : index
    %2 = vector.load %arg3[%c0_3, %c0_4] : memref<32x1xf32, #tpu.memory_space<vmem>>, vector<32x1xf32>
    %cst = arith.constant dense<0.000000e+00> : vector<32x1024xf32>
    %3 = tpu.matmul %1, %0, %cst {dimension_numbers = #tpu.dot_dimension_numbers<[1], [1], [0], [0], [0, 0, 1, 0], [], []>} : vector<32x64xf32>, vector<1024x64xf32>, vector<32x1024xf32> -> vector<32x1024xf32>
    %4 = vector.broadcast %2 : vector<32x1xf32> to vector<32x1024xf32>
    %5 = arith.addf %3, %4 : vector<32x1024xf32>
    %cst_5 = arith.constant 0.000000e+00 : f32
    %6 = vector.broadcast %cst_5 : f32 to vector<32x1024xf32>
    %7 = arith.cmpf ogt, %5, %6 : vector<32x1024xf32>
    %8 = math.exp %5 : vector<32x1024xf32>
    %cst_6 = arith.constant 1.000000e+00 : f32
    %9 = vector.broadcast %cst_6 : f32 to vector<32x1024xf32>
    %10 = arith.subf %8, %9 : vector<32x1024xf32>
    %cst_7 = arith.constant 1.67326319 : f32
    %11 = vector.broadcast %cst_7 : f32 to vector<32x1024xf32>
    %12 = arith.mulf %11, %10 : vector<32x1024xf32>
    %13 = arith.select %7, %5, %12 : vector<32x1024xi1>, vector<32x1024xf32>
    %cst_8 = arith.constant 1.05070102 : f32
    %14 = vector.broadcast %cst_8 : f32 to vector<32x1024xf32>
    %15 = arith.mulf %14, %13 : vector<32x1024xf32>
    %c0_9 = arith.constant 0 : index
    %c0_10 = arith.constant 0 : index
    %16 = vector.load %arg4[%c0_9, %c0_10] : memref<32x32xf32, #tpu.memory_space<vmem>>, vector<32x32xf32>
    %c0_11 = arith.constant 0 : index
    %c0_12 = arith.constant 0 : index
    %17 = vector.load %arg5[%c0_11, %c0_12] : memref<32x1xf32, #tpu.memory_space<vmem>>, vector<32x1xf32>
    %cst_13 = arith.constant dense<0.000000e+00> : vector<32x1024xf32>
    %18 = tpu.matmul %16, %15, %cst_13 {dimension_numbers = #tpu.dot_dimension_numbers<[1], [0], [0], [1], [0, 0, 1, 1], [], []>} : vector<32x32xf32>, vector<32x1024xf32>, vector<32x1024xf32> -> vector<32x1024xf32>
    %19 = vector.broadcast %17 : vector<32x1xf32> to vector<32x1024xf32>
    %20 = arith.addf %18, %19 : vector<32x1024xf32>
    %cst_14 = arith.constant 0.000000e+00 : f32
    %21 = vector.broadcast %cst_14 : f32 to vector<32x1024xf32>
    %22 = arith.cmpf ogt, %20, %21 : vector<32x1024xf32>
    %23 = math.exp %20 : vector<32x1024xf32>
    %cst_15 = arith.constant 1.000000e+00 : f32
    %24 = vector.broadcast %cst_15 : f32 to vector<32x1024xf32>
    %25 = arith.subf %23, %24 : vector<32x1024xf32>
    %cst_16 = arith.constant 1.67326319 : f32
    %26 = vector.broadcast %cst_16 : f32 to vector<32x1024xf32>
    %27 = arith.mulf %26, %25 : vector<32x1024xf32>
    %28 = arith.select %22, %20, %27 : vector<32x1024xi1>, vector<32x1024xf32>
    %cst_17 = arith.constant 1.05070102 : f32
    %29 = vector.broadcast %cst_17 : f32 to vector<32x1024xf32>
    %30 = arith.mulf %29, %28 : vector<32x1024xf32>
    %c0_18 = arith.constant 0 : index
    %c0_19 = arith.constant 0 : index
    %31 = vector.load %arg6[%c0_18, %c0_19] : memref<32x1xf32, #tpu.memory_space<vmem>>, vector<32x1xf32>
    %c0_20 = arith.constant 0 : index
    %c0_21 = arith.constant 0 : index
    %32 = vector.load %arg7[%c0_20, %c0_21] : memref<1x1xf32, #tpu.memory_space<vmem>>, vector<1x1xf32>
    %33 = vector.broadcast %31 : vector<32x1xf32> to vector<32x1024xf32>
    %34 = arith.mulf %30, %33 : vector<32x1024xf32>
    %cst_22 = arith.constant dense<0.000000e+00> : vector<1024xf32>
    %35 = vector.multi_reduction <add>, %34, %cst_22 [0] : vector<32x1024xf32> to vector<1024xf32>
    %36 = vector.shape_cast %35 : vector<1024xf32> to vector<1x1024xf32>
    %37 = vector.broadcast %32 : vector<1x1xf32> to vector<1x1024xf32>
    %38 = arith.addf %36, %37 : vector<1x1024xf32>
    %c0_23 = arith.constant 0 : index
    %c0_24 = arith.constant 0 : index
    %c0_25 = arith.constant 0 : index
    %39 = vector.load %arg8[%c0_23, %c0_24, %c0_25] : memref<1x1x1024xf32, #tpu.memory_space<vmem>>, vector<1x1x1024xf32>
    %40 = vector.shape_cast %39 : vector<1x1x1024xf32> to vector<1x1024xf32>
    %41 = vector.shape_cast %38 : vector<1x1024xf32> to vector<1x1x1024xf32>
    tpu.vector_store %arg8[%c0_23, %c0_24, %c0_25], %41 {strides = array<i32>} : memref<1x1x1024xf32, #tpu.memory_space<vmem>>, vector<1x1x1024xf32>,
    return
  }
  func.func @transform_0(%arg0: i32) -> (i32, i32) {
    %c0_i32 = arith.constant 0 : i32
    %c0_i32_0 = arith.constant 0 : i32
    return %arg0, %c0_i32 : i32, i32
  }
  func.func @transform_1(%arg0: i32) -> (i32, i32) {
    %c0_i32 = arith.constant 0 : i32
    %c0_i32_0 = arith.constant 0 : i32
    %c0_i32_1 = arith.constant 0 : i32
    return %c0_i32, %c0_i32_0 : i32, i32
  }
  func.func @transform_2(%arg0: i32) -> (i32, i32) {
    %c0_i32 = arith.constant 0 : i32
    %c0_i32_0 = arith.constant 0 : i32
    %c0_i32_1 = arith.constant 0 : i32
    return %c0_i32, %c0_i32_0 : i32, i32
  }
  func.func @transform_3(%arg0: i32) -> (i32, i32) {
    %c0_i32 = arith.constant 0 : i32
    %c0_i32_0 = arith.constant 0 : i32
    %c0_i32_1 = arith.constant 0 : i32
    return %c0_i32, %c0_i32_0 : i32, i32
  }
  func.func @transform_4(%arg0: i32) -> (i32, i32) {
    %c0_i32 = arith.constant 0 : i32
    %c0_i32_0 = arith.constant 0 : i32
    %c0_i32_1 = arith.constant 0 : i32
    return %c0_i32, %c0_i32_0 : i32, i32
  }
  func.func @transform_5(%arg0: i32) -> (i32, i32) {
    %c0_i32 = arith.constant 0 : i32
    %c0_i32_0 = arith.constant 0 : i32
    %c0_i32_1 = arith.constant 0 : i32
    return %c0_i32, %c0_i32_0 : i32, i32
  }
  func.func @transform_6(%arg0: i32) -> (i32, i32) {
    %c0_i32 = arith.constant 0 : i32
    %c0_i32_0 = arith.constant 0 : i32
    %c0_i32_1 = arith.constant 0 : i32
    return %c0_i32, %c0_i32_0 : i32, i32
  }
  func.func @transform_7(%arg0: i32) -> (i32, i32, i32) {
    %c0_i32 = arith.constant 0 : i32
    %c0_i32_0 = arith.constant 0 : i32
    %c0_i32_1 = arith.constant 0 : i32
    return %arg0, %c0_i32, %c0_i32_0 : i32, i32, i32
  }
}

</mosaic_0001>

<llo_original>
// kernel: tpu_custom_call.1
$region0: #{tpu_custom_call.1}
  #allocation0 [shape = 'u32[]', space=smem, size = 0x4, offset = 0x4, fixed_abs, tag = 'smem constant byte address 0x4 - core index']
  #allocation1 [shape = 'u32[144,128]{1,0:T(1,128)}', space=vmem, size = 0x12000, scoped, tag = 'internal scratch']
  #allocation2 [shape = 'f32[1,1]{1,0:T(1,128)S(1)}', space=vmem, size = 0x200, scoped, tag = 'scoped memory for tpu_custom_call.1']
  %s0 = inlined_call_operand.vmem [shape: f32[3072,64], index: 0, kind: input, shape index: {}]
  %s1 = inlined_call_operand.vmem [shape: f32[32,64], index: 1, kind: input, shape index: {}]
  %s2 = inlined_call_operand.vmem [shape: f32[32,1], index: 2, kind: input, shape index: {}]
  %s3 = inlined_call_operand.vmem [shape: f32[32,32], index: 3, kind: input, shape index: {}]
  %s4 = inlined_call_operand.vmem [shape: f32[32,1], index: 4, kind: input, shape index: {}]
  %s5 = inlined_call_operand.vmem [shape: f32[32,1], index: 5, kind: input, shape index: {}]
  %s6 = inlined_call_operand.<no memory space> [shape: f32[1,1], index: 6, kind: input, shape index: {}]
  %s7 = inlined_call_operand.hbm [shape: f32[3,1,1024], index: 7, kind: output, shape index: {}]
  %s8 = sld [smem:[#allocation0]]
  $region61: #{tpu_custom_call.1} parent=0
    _
  %s10 = ssub.s32 1, %s8
  %s11 = scalar_select 0, %s10, %s8
  %v12 = vstv %s6
  %13 = vst [vmem:[#allocation2] sm:$0x1] %v12
  $region1: #{tpu_custom_call.1} parent=0
    #allocation3 [shape = 'u8[8192]{0}', space=vmem, size = 0x2000, scoped, tag = 'output window, operand 0']
    #allocation4 [shape = 's32[2]{0}', space=sflag, size = 0x8, scoped, tag = 'scoped memory for tpu_custom_call.1']
    %14 = vsyncpa [#allocation4], 0
    %s15 = scalar_lea.sflag [#allocation4], 1
    %16 = vsyncpa %s15, 0
    loop: start=0, step=1, limit=5
    $region2: #{tpu_custom_call.1} parent=1 // loop_pre_header
      _
    $region3: #{tpu_custom_call.1} parent=1 // loop_header
      %s18 = sphi 0, %s22
      %p19 = scmp.ge.s32.totalorder %s18, 5
      %s28 = sphi 0, %s30
      %s31 = sphi 0, %s28
      %s32 = sphi 0, %s31
      %s48 = sphi 0, %s32
      %s52 = sphi 0, %s52
      %s54 = sphi 0, %s52
      %s55 = sphi 0, %s54
      %s69 = sphi 0, %s55
      %s73 = sphi 0, %s73
      %s75 = sphi 0, %s73
      %s76 = sphi 0, %s75
      %s90 = sphi 0, %s76
      %s94 = sphi 0, %s94
      %s96 = sphi 0, %s94
      %s97 = sphi 0, %s96
      %s111 = sphi 0, %s97
      %s115 = sphi 0, %s115
      %s117 = sphi 0, %s115
      %s118 = sphi 0, %s117
      %s132 = sphi 0, %s118
      %s136 = sphi 0, %s136
      %s138 = sphi 0, %s136
      %s139 = sphi 0, %s138
      %s153 = sphi 0, %s139
      %s157 = sphi 0, %s157
      %s159 = sphi 0, %s157
      %s160 = sphi 0, %s159
      %s174 = sphi 0, %s160
      %s180 = sphi 0, %s182
      %s183 = sphi 0, %s180
      %s184 = sphi 0, %s183
      %s200 = sphi 0, %s184
    $region4: #{tpu_custom_call.1} parent=1 // loop_header_branch
      %21 = sbr.rel (%p19) target = $region8
    $region5: #{tpu_custom_call.1} parent=1 // loop_body
      %s23 = ssub.s32 %s18, 1
      %s24 = ssub.s32 %s18, 2
      %s25 = sadd.s32 %s18, 1
      %s26 = ssub.s32 %s18, %s25
      %p27 = scmp.eq.s32.totalorder %s26, 0
      %s29 = sadd.s32 %s28, 1
      %s30 = scalar_select %p27, %s28, %s29
      %p33 = pneg %p27
      %p34 = scmp.eq.s32.totalorder %s18, 2
      %p35 = por %p33, %p34
      %p36 = scmp.ne.s32.totalorder %s28, %s31
      %p37 = scmp.eq.s32.totalorder %s18, 0
      %p38 = por %p36, %p37
      %p39 = scmp.ne.s32.totalorder %s28, %s31
      %p40 = scmp.eq.s32.totalorder %s23, 2
      %p41 = por %p39, %p40
      %p42 = scmp.ne.s32.totalorder %s31, %s32
      %p43 = scmp.eq.s32.totalorder %s23, 0
      %p44 = por %p42, %p43
      %p45 = scmp.ne.s32.totalorder %s31, %s32
      %p46 = scmp.eq.s32.totalorder %s24, 2
      %p47 = por %p45, %p46
      %p49 = scmp.ne.s32.totalorder %s32, %s48
      %p50 = scmp.eq.s32.totalorder %s24, 0
      %p51 = por %p49, %p50
      %s53 = sadd.s32 %s52, 1
      %p56 = scmp.eq.s32.totalorder %s18, 2
      %p57 = scmp.ne.s32.totalorder %s52, %s54
      %p58 = scmp.eq.s32.totalorder %s18, 0
      %p59 = por %p57, %p58
      %p60 = scmp.ne.s32.totalorder %s52, %s54
      %p61 = scmp.eq.s32.totalorder %s23, 2
      %p62 = por %p60, %p61
      %p63 = scmp.ne.s32.totalorder %s54, %s55
      %p64 = scmp.eq.s32.totalorder %s23, 0
      %p65 = por %p63, %p64
      %p66 = scmp.ne.s32.totalorder %s54, %s55
      %p67 = scmp.eq.s32.totalorder %s24, 2
      %p68 = por %p66, %p67
      %p70 = scmp.ne.s32.totalorder %s55, %s69
      %p71 = scmp.eq.s32.totalorder %s24, 0
      %p72 = por %p70, %p71
      %s74 = sadd.s32 %s73, 1
      %p77 = scmp.eq.s32.totalorder %s18, 2
      %p78 = scmp.ne.s32.totalorder %s73, %s75
      %p79 = scmp.eq.s32.totalorder %s18, 0
      %p80 = por %p78, %p79
      %p81 = scmp.ne.s32.totalorder %s73, %s75
      %p82 = scmp.eq.s32.totalorder %s23, 2
      %p83 = por %p81, %p82
      %p84 = scmp.ne.s32.totalorder %s75, %s76
      %p85 = scmp.eq.s32.totalorder %s23, 0
      %p86 = por %p84, %p85
      %p87 = scmp.ne.s32.totalorder %s75, %s76
      %p88 = scmp.eq.s32.totalorder %s24, 2
      %p89 = por %p87, %p88
      %p91 = scmp.ne.s32.totalorder %s76, %s90
      %p92 = scmp.eq.s32.totalorder %s24, 0
      %p93 = por %p91, %p92
      %s95 = sadd.s32 %s94, 1
      %p98 = scmp.eq.s32.totalorder %s18, 2
      %p99 = scmp.ne.s32.totalorder %s94, %s96
      %p100 = scmp.eq.s32.totalorder %s18, 0
      %p101 = por %p99, %p100
      %p102 = scmp.ne.s32.totalorder %s94, %s96
      %p103 = scmp.eq.s32.totalorder %s23, 2
      %p104 = por %p102, %p103
      %p105 = scmp.ne.s32.totalorder %s96, %s97
      %p106 = scmp.eq.s32.totalorder %s23, 0
      %p107 = por %p105, %p106
      %p108 = scmp.ne.s32.totalorder %s96, %s97
      %p109 = scmp.eq.s32.totalorder %s24, 2
      %p110 = por %p108, %p109
      %p112 = scmp.ne.s32.totalorder %s97, %s111
      %p113 = scmp.eq.s32.totalorder %s24, 0
      %p114 = por %p112, %p113
      %s116 = sadd.s32 %s115, 1
      %p119 = scmp.eq.s32.totalorder %s18, 2
      %p120 = scmp.ne.s32.totalorder %s115, %s117
      %p121 = scmp.eq.s32.totalorder %s18, 0
      %p122 = por %p120, %p121
      %p123 = scmp.ne.s32.totalorder %s115, %s117
      %p124 = scmp.eq.s32.totalorder %s23, 2
      %p125 = por %p123, %p124
      %p126 = scmp.ne.s32.totalorder %s117, %s118
      %p127 = scmp.eq.s32.totalorder %s23, 0
      %p128 = por %p126, %p127
      %p129 = scmp.ne.s32.totalorder %s117, %s118
      %p130 = scmp.eq.s32.totalorder %s24, 2
      %p131 = por %p129, %p130
      %p133 = scmp.ne.s32.totalorder %s118, %s132
      %p134 = scmp.eq.s32.totalorder %s24, 0
      %p135 = por %p133, %p134
      %s137 = sadd.s32 %s136, 1
      %p140 = scmp.eq.s32.totalorder %s18, 2
      %p141 = scmp.ne.s32.totalorder %s136, %s138
      %p142 = scmp.eq.s32.totalorder %s18, 0
      %p143 = por %p141, %p142
      %p144 = scmp.ne.s32.totalorder %s136, %s138
      %p145 = scmp.eq.s32.totalorder %s23, 2
      %p146 = por %p144, %p145
      %p147 = scmp.ne.s32.totalorder %s138, %s139
      %p148 = scmp.eq.s32.totalorder %s23, 0
      %p149 = por %p147, %p148
      %p150 = scmp.ne.s32.totalorder %s138, %s139
      %p151 = scmp.eq.s32.totalorder %s24, 2
      %p152 = por %p150, %p151
      %p154 = scmp.ne.s32.totalorder %s139, %s153
      %p155 = scmp.eq.s32.totalorder %s24, 0
      %p156 = por %p154, %p155
      %s158 = sadd.s32 %s157, 1
      %p161 = scmp.eq.s32.totalorder %s18, 2
      %p162 = scmp.ne.s32.totalorder %s157, %s159
      %p163 = scmp.eq.s32.totalorder %s18, 0
      %p164 = por %p162, %p163
      %p165 = scmp.ne.s32.totalorder %s157, %s159
      %p166 = scmp.eq.s32.totalorder %s23, 2
      %p167 = por %p165, %p166
      %p168 = scmp.ne.s32.totalorder %s159, %s160
      %p169 = scmp.eq.s32.totalorder %s23, 0
      %p170 = por %p168, %p169
      %p171 = scmp.ne.s32.totalorder %s159, %s160
      %p172 = scmp.eq.s32.totalorder %s24, 2
      %p173 = por %p171, %p172
      %p175 = scmp.ne.s32.totalorder %s160, %s174
      %p176 = scmp.eq.s32.totalorder %s24, 0
      %p177 = por %p175, %p176
      %s178 = ssub.s32 %s18, %s25
      %p179 = scmp.eq.s32.totalorder %s178, 0
      %s181 = sadd.s32 %s180, 1
      %s182 = scalar_select %p179, %s180, %s181
      %p185 = pneg %p179
      %p186 = scmp.eq.s32.totalorder %s18, 2
      %p187 = por %p185, %p186
      %p188 = scmp.ne.s32.totalorder %s180, %s183
      %p189 = scmp.eq.s32.totalorder %s18, 0
      %p190 = por %p188, %p189
      %p191 = scmp.ne.s32.totalorder %s180, %s183
      %p192 = scmp.eq.s32.totalorder %s23, 2
      %p193 = por %p191, %p192
      %p194 = scmp.ne.s32.totalorder %s183, %s184
      %p195 = scmp.eq.s32.totalorder %s23, 0
      %p196 = por %p194, %p195
      %p197 = scmp.ne.s32.totalorder %s183, %s184
      %p198 = scmp.eq.s32.totalorder %s24, 2
      %p199 = por %p197, %p198
      %p201 = scmp.ne.s32.totalorder %s184, %s200
      %p202 = scmp.eq.s32.totalorder %s24, 0
      %p203 = por %p201, %p202
      %p204 = scmp.le.s32.totalorder 1, %s18
      %p205 = scmp.lt.s32.totalorder %s18, 4
      %p206 = pnand %p204, %p205
      %p207 = pneg %p206
      // Predicated region
      $region9: #{tpu_custom_call.1} parent=5 // pred_check
        _
      $region10: #{tpu_custom_call.1} parent=5 // pred_check_branch
        %209 = sbr.rel (%p206) target = $region12
      $region11: #{tpu_custom_call.1} parent=5 // pred_region
        %s210 = ssub.s32 %s18, 1
        // Predicated region
        $region13: #{tpu_custom_call.1} parent=11 // pred_check
          %p211 = pneg %p65
        $region14: #{tpu_custom_call.1} parent=11 // pred_check_branch
          %213 = sbr.rel (%p211) target = $region16
        $region15: #{tpu_custom_call.1} parent=11 // pred_region
          _
        $region16: #{tpu_custom_call.1} parent=11 // pred_fallthru
          _
        // Predicated region
        $region17: #{tpu_custom_call.1} parent=11 // pred_check
          %p214 = pneg %p86
        $region18: #{tpu_custom_call.1} parent=11 // pred_check_branch
          %216 = sbr.rel (%p214) target = $region20
        $region19: #{tpu_custom_call.1} parent=11 // pred_region
          _
        $region20: #{tpu_custom_call.1} parent=11 // pred_fallthru
          _
        // Predicated region
        $region21: #{tpu_custom_call.1} parent=11 // pred_check
          %p217 = pneg %p107
        $region22: #{tpu_custom_call.1} parent=11 // pred_check_branch
          %219 = sbr.rel (%p217) target = $region24
        $region23: #{tpu_custom_call.1} parent=11 // pred_region
          _
        $region24: #{tpu_custom_call.1} parent=11 // pred_fallthru
          _
        // Predicated region
        $region25: #{tpu_custom_call.1} parent=11 // pred_check
          %p220 = pneg %p128
        $region26: #{tpu_custom_call.1} parent=11 // pred_check_branch
          %222 = sbr.rel (%p220) target = $region28
        $region27: #{tpu_custom_call.1} parent=11 // pred_region
          _
        $region28: #{tpu_custom_call.1} parent=11 // pred_fallthru
          _
        // Predicated region
        $region29: #{tpu_custom_call.1} parent=11 // pred_check
          %p223 = pneg %p149
        $region30: #{tpu_custom_call.1} parent=11 // pred_check_branch
          %225 = sbr.rel (%p223) target = $region32
        $region31: #{tpu_custom_call.1} parent=11 // pred_region
          _
        $region32: #{tpu_custom_call.1} parent=11 // pred_fallthru
          _
        // Predicated region
        $region33: #{tpu_custom_call.1} parent=11 // pred_check
          %p226 = pneg %p170
        $region34: #{tpu_custom_call.1} parent=11 // pred_check_branch
          %228 = sbr.rel (%p226) target = $region36
        $region35: #{tpu_custom_call.1} parent=11 // pred_region
          _
        $region36: #{tpu_custom_call.1} parent=11 // pred_fallthru
          _
      $region12: #{tpu_custom_call.1} parent=5 // pred_fallthru
        _
      %p229 = scmp.lt.s32.totalorder %s18, 3
      // Predicated region
      $region37: #{tpu_custom_call.1} parent=5 // pred_check
        %p230 = pneg %p229
      $region38: #{tpu_custom_call.1} parent=5 // pred_check_branch
        %232 = sbr.rel (%p230) target = $region40
      $region39: #{tpu_custom_call.1} parent=5 // pred_region
        // Predicated region
        $region41: #{tpu_custom_call.1} parent=39 // pred_check
          %p233 = pneg %p38
        $region42: #{tpu_custom_call.1} parent=39 // pred_check_branch
          %235 = sbr.rel (%p233) target = $region44
        $region43: #{tpu_custom_call.1} parent=39 // pred_region
          %s236 = smul.u32 128, %s18
          %p237 = scmp.lt.s32.totalorder %s236, 383
          %s238 = scalar_select %p237, %s236, 383
          %s239 = smul.addr %s238, 8
          %s240 = scalar_lea.vmem %s0, %s239
          %s241 = smul.u32 128, %s18
        $region44: #{tpu_custom_call.1} parent=39 // pred_fallthru
          _
      $region40: #{tpu_custom_call.1} parent=5 // pred_fallthru
        _
      %p242 = scmp.le.s32.totalorder 1, %s18
      %p243 = scmp.lt.s32.totalorder %s18, 4
      %p244 = pnand %p242, %p243
      %p245 = pneg %p244
      // Predicated region
      $region45: #{tpu_custom_call.1} parent=5 // pred_check
        _
      $region46: #{tpu_custom_call.1} parent=5 // pred_check_branch
        %247 = sbr.rel (%p244) target = $region48
      $region47: #{tpu_custom_call.1} parent=5 // pred_region
        %s248 = ssub.s32 %s18, 1
        %s249 = smul.u32 128, %s23
        %p250 = scmp.lt.s32.totalorder %s249, 383
        %s251 = scalar_select %p250, %s249, 383
        %s252 = smul.addr %s251, 8
        %s253 = scalar_lea.vmem %s0, %s252
        %p254 = pneg %p44
        %p255 = pneg %p41
        %p256 = pneg %p65
        %p257 = pneg %p62
        %p258 = pneg %p86
        %p259 = pneg %p83
        %p260 = pneg %p107
        %p261 = pneg %p104
        %p262 = pneg %p128
        %p263 = pneg %p125
        %p264 = pneg %p149
        %p265 = pneg %p146
        %p266 = pneg %p170
        %p267 = pneg %p167
        %p268 = pneg %p196
        %p269 = pneg %p193
        %s270 = sand.u32 %s183, 1
        %s271 = scalar_lea.sflag [#allocation4], %s270
        %s272 = sand.u32 %s183, 1
        %s273 = smul.addr %s272, 8
        %s274 = scalar_lea.vmem [#allocation3], %s273
        %s275 = smul.u32 128, %s23
        %p276 = scmp.lt.s32.totalorder %s275, 383
        %s277 = scalar_select %p276, %s275, 383
        %s278 = smul.addr %s277, 8
        %s279 = scalar_lea.vmem %s0, %s278
        %s280 = smul.u32 128, %s23
        %v281 = vld [vmem:[%s279] sm:$0xff]
        %v282 = vld [vmem:[%s279 + $0x8] sm:$0xff]
        %v283 = vld [vmem:[%s279 + $0x10] sm:$0xff]
        %v284 = vld [vmem:[%s279 + $0x18] sm:$0xff]
        %v285 = vld [vmem:[%s279 + $0x20] sm:$0xff]
        %v286 = vld [vmem:[%s279 + $0x28] sm:$0xff]
        %v287 = vld [vmem:[%s279 + $0x30] sm:$0xff]
        %v288 = vld [vmem:[%s279 + $0x38] sm:$0xff]
        %v289 = vld [vmem:[%s279 + $0x40] sm:$0xff]
        %v290 = vld [vmem:[%s279 + $0x48] sm:$0xff]
        %v291 = vld [vmem:[%s279 + $0x50] sm:$0xff]
        %v292 = vld [vmem:[%s279 + $0x58] sm:$0xff]
        %v293 = vld [vmem:[%s279 + $0x60] sm:$0xff]
        %v294 = vld [vmem:[%s279 + $0x68] sm:$0xff]
        %v295 = vld [vmem:[%s279 + $0x70] sm:$0xff]
        %v296 = vld [vmem:[%s279 + $0x78] sm:$0xff]
        %v297 = vld [vmem:[%s279 + $0x80] sm:$0xff]
        %v298 = vld [vmem:[%s279 + $0x88] sm:$0xff]
        %v299 = vld [vmem:[%s279 + $0x90] sm:$0xff]
        %v300 = vld [vmem:[%s279 + $0x98] sm:$0xff]
        %v301 = vld [vmem:[%s279 + $0xa0] sm:$0xff]
        %v302 = vld [vmem:[%s279 + $0xa8] sm:$0xff]
        %v303 = vld [vmem:[%s279 + $0xb0] sm:$0xff]
        %v304 = vld [vmem:[%s279 + $0xb8] sm:$0xff]
        %v305 = vld [vmem:[%s279 + $0xc0] sm:$0xff]
        %v306 = vld [vmem:[%s279 + $0xc8] sm:$0xff]
        %v307 = vld [vmem:[%s279 + $0xd0] sm:$0xff]
        %v308 = vld [vmem:[%s279 + $0xd8] sm:$0xff]
        %v309 = vld [vmem:[%s279 + $0xe0] sm:$0xff]
        %v310 = vld [vmem:[%s279 + $0xe8] sm:$0xff]
        %v311 = vld [vmem:[%s279 + $0xf0] sm:$0xff]
        %v312 = vld [vmem:[%s279 + $0xf8] sm:$0xff]
        %v313 = vld [vmem:[%s279 + $0x100] sm:$0xff]
        %v314 = vld [vmem:[%s279 + $0x108] sm:$0xff]
        %v315 = vld [vmem:[%s279 + $0x110] sm:$0xff]
        %v316 = vld [vmem:[%s279 + $0x118] sm:$0xff]
        %v317 = vld [vmem:[%s279 + $0x120] sm:$0xff]
        %v318 = vld [vmem:[%s279 + $0x128] sm:$0xff]
        %v319 = vld [vmem:[%s279 + $0x130] sm:$0xff]
        %v320 = vld [vmem:[%s279 + $0x138] sm:$0xff]
        %v321 = vld [vmem:[%s279 + $0x140] sm:$0xff]
        %v322 = vld [vmem:[%s279 + $0x148] sm:$0xff]
        %v323 = vld [vmem:[%s279 + $0x150] sm:$0xff]
        %v324 = vld [vmem:[%s279 + $0x158] sm:$0xff]
        %v325 = vld [vmem:[%s279 + $0x160] sm:$0xff]
        %v326 = vld [vmem:[%s279 + $0x168] sm:$0xff]
        %v327 = vld [vmem:[%s279 + $0x170] sm:$0xff]
        %v328 = vld [vmem:[%s279 + $0x178] sm:$0xff]
        %v329 = vld [vmem:[%s279 + $0x180] sm:$0xff]
        %v330 = vld [vmem:[%s279 + $0x188] sm:$0xff]
        %v331 = vld [vmem:[%s279 + $0x190] sm:$0xff]
        %v332 = vld [vmem:[%s279 + $0x198] sm:$0xff]
        %v333 = vld [vmem:[%s279 + $0x1a0] sm:$0xff]
        %v334 = vld [vmem:[%s279 + $0x1a8] sm:$0xff]
        %v335 = vld [vmem:[%s279 + $0x1b0] sm:$0xff]
        %v336 = vld [vmem:[%s279 + $0x1b8] sm:$0xff]
        %v337 = vld [vmem:[%s279 + $0x1c0] sm:$0xff]
        %v338 = vld [vmem:[%s279 + $0x1c8] sm:$0xff]
        %v339 = vld [vmem:[%s279 + $0x1d0] sm:$0xff]
        %v340 = vld [vmem:[%s279 + $0x1d8] sm:$0xff]
        %v341 = vld [vmem:[%s279 + $0x1e0] sm:$0xff]
        %v342 = vld [vmem:[%s279 + $0x1e8] sm:$0xff]
        %v343 = vld [vmem:[%s279 + $0x1f0] sm:$0xff]
        %v344 = vld [vmem:[%s279 + $0x1f8] sm:$0xff]
        %v345 = vld [vmem:[%s279 + $0x200] sm:$0xff]
        %v346 = vld [vmem:[%s279 + $0x208] sm:$0xff]
        %v347 = vld [vmem:[%s279 + $0x210] sm:$0xff]
        %v348 = vld [vmem:[%s279 + $0x218] sm:$0xff]
        %v349 = vld [vmem:[%s279 + $0x220] sm:$0xff]
        %v350 = vld [vmem:[%s279 + $0x228] sm:$0xff]
        %v351 = vld [vmem:[%s279 + $0x230] sm:$0xff]
        %v352 = vld [vmem:[%s279 + $0x238] sm:$0xff]
        %v353 = vld [vmem:[%s279 + $0x240] sm:$0xff]
        %v354 = vld [vmem:[%s279 + $0x248] sm:$0xff]
        %v355 = vld [vmem:[%s279 + $0x250] sm:$0xff]
        %v356 = vld [vmem:[%s279 + $0x258] sm:$0xff]
        %v357 = vld [vmem:[%s279 + $0x260] sm:$0xff]
        %v358 = vld [vmem:[%s279 + $0x268] sm:$0xff]
        %v359 = vld [vmem:[%s279 + $0x270] sm:$0xff]
        %v360 = vld [vmem:[%s279 + $0x278] sm:$0xff]
        %v361 = vld [vmem:[%s279 + $0x280] sm:$0xff]
        %v362 = vld [vmem:[%s279 + $0x288] sm:$0xff]
        %v363 = vld [vmem:[%s279 + $0x290] sm:$0xff]
        %v364 = vld [vmem:[%s279 + $0x298] sm:$0xff]
        %v365 = vld [vmem:[%s279 + $0x2a0] sm:$0xff]
        %v366 = vld [vmem:[%s279 + $0x2a8] sm:$0xff]
        %v367 = vld [vmem:[%s279 + $0x2b0] sm:$0xff]
        %v368 = vld [vmem:[%s279 + $0x2b8] sm:$0xff]
        %v369 = vld [vmem:[%s279 + $0x2c0] sm:$0xff]
        %v370 = vld [vmem:[%s279 + $0x2c8] sm:$0xff]
        %v371 = vld [vmem:[%s279 + $0x2d0] sm:$0xff]
        %v372 = vld [vmem:[%s279 + $0x2d8] sm:$0xff]
        %v373 = vld [vmem:[%s279 + $0x2e0] sm:$0xff]
        %v374 = vld [vmem:[%s279 + $0x2e8] sm:$0xff]
        %v375 = vld [vmem:[%s279 + $0x2f0] sm:$0xff]
        %v376 = vld [vmem:[%s279 + $0x2f8] sm:$0xff]
        %v377 = vld [vmem:[%s279 + $0x300] sm:$0xff]
        %v378 = vld [vmem:[%s279 + $0x308] sm:$0xff]
        %v379 = vld [vmem:[%s279 + $0x310] sm:$0xff]
        %v380 = vld [vmem:[%s279 + $0x318] sm:$0xff]
        %v381 = vld [vmem:[%s279 + $0x320] sm:$0xff]
        %v382 = vld [vmem:[%s279 + $0x328] sm:$0xff]
        %v383 = vld [vmem:[%s279 + $0x330] sm:$0xff]
        %v384 = vld [vmem:[%s279 + $0x338] sm:$0xff]
        %v385 = vld [vmem:[%s279 + $0x340] sm:$0xff]
        %v386 = vld [vmem:[%s279 + $0x348] sm:$0xff]
        %v387 = vld [vmem:[%s279 + $0x350] sm:$0xff]
        %v388 = vld [vmem:[%s279 + $0x358] sm:$0xff]
        %v389 = vld [vmem:[%s279 + $0x360] sm:$0xff]
        %v390 = vld [vmem:[%s279 + $0x368] sm:$0xff]
        %v391 = vld [vmem:[%s279 + $0x370] sm:$0xff]
        %v392 = vld [vmem:[%s279 + $0x378] sm:$0xff]
        %v393 = vld [vmem:[%s279 + $0x380] sm:$0xff]
        %v394 = vld [vmem:[%s279 + $0x388] sm:$0xff]
        %v395 = vld [vmem:[%s279 + $0x390] sm:$0xff]
        %v396 = vld [vmem:[%s279 + $0x398] sm:$0xff]
        %v397 = vld [vmem:[%s279 + $0x3a0] sm:$0xff]
        %v398 = vld [vmem:[%s279 + $0x3a8] sm:$0xff]
        %v399 = vld [vmem:[%s279 + $0x3b0] sm:$0xff]
        %v400 = vld [vmem:[%s279 + $0x3b8] sm:$0xff]
        %v401 = vld [vmem:[%s279 + $0x3c0] sm:$0xff]
        %v402 = vld [vmem:[%s279 + $0x3c8] sm:$0xff]
        %v403 = vld [vmem:[%s279 + $0x3d0] sm:$0xff]
        %v404 = vld [vmem:[%s279 + $0x3d8] sm:$0xff]
        %v405 = vld [vmem:[%s279 + $0x3e0] sm:$0xff]
        %v406 = vld [vmem:[%s279 + $0x3e8] sm:$0xff]
        %v407 = vld [vmem:[%s279 + $0x3f0] sm:$0xff]
        %v408 = vld [vmem:[%s279 + $0x3f8] sm:$0xff]
        %v409 = vld [vmem:[%s1] sm:$0xff]
        %v410 = vld [vmem:[%s1 + $0x8] sm:$0xff]
        %v411 = vld [vmem:[%s1 + $0x10] sm:$0xff]
        %v412 = vld [vmem:[%s1 + $0x18] sm:$0xff]
        %v413 = vld [vmem:[%s2] sm:$0xff]
        %v414 = vld [vmem:[%s2 + $0x8] sm:$0xff]
        %v415 = vld [vmem:[%s2 + $0x10] sm:$0xff]
        %v416 = vld [vmem:[%s2 + $0x18] sm:$0xff]
        %418 = vset.pattern.permute.xlu0 0
        %419 = vperm.xlu0 %418, %v413
        %v420 = vpop.permute.xlu0 %419
        %423 = vset.pattern.permute.xlu0 0
        %424 = vperm.xlu0 %423, %v414
        %v425 = vpop.permute.xlu0 %424
        %428 = vset.pattern.permute.xlu0 0
        %429 = vperm.xlu0 %428, %v415
        %v430 = vpop.permute.xlu0 %429
        %433 = vset.pattern.permute.xlu0 0
        %434 = vperm.xlu0 %433, %v416
        %v435 = vpop.permute.xlu0 %434
        %vm437 = vcmask 523264
        %v439 = vsel %vm437, %v409, 0
        %v442 = vsel %vm437, %v410, 0
        %v445 = vsel %vm437, %v411, 0
        %v448 = vsel %vm437, %v412, 0
        %v451 = vsel %vm437, %v281, 0
        %v454 = vsel %vm437, %v282, 0
        %v457 = vsel %vm437, %v283, 0
        %v460 = vsel %vm437, %v284, 0
        %v463 = vsel %vm437, %v285, 0
        %v466 = vsel %vm437, %v286, 0
        %v469 = vsel %vm437, %v287, 0
        %v472 = vsel %vm437, %v288, 0
        %v475 = vsel %vm437, %v289, 0
        %v478 = vsel %vm437, %v290, 0
        %v481 = vsel %vm437, %v291, 0
        %v484 = vsel %vm437, %v292, 0
        %v487 = vsel %vm437, %v293, 0
        %v490 = vsel %vm437, %v294, 0
        %v493 = vsel %vm437, %v295, 0
        %v496 = vsel %vm437, %v296, 0
        %v499 = vsel %vm437, %v297, 0
        %v502 = vsel %vm437, %v298, 0
        %v505 = vsel %vm437, %v299, 0
        %v508 = vsel %vm437, %v300, 0
        %v511 = vsel %vm437, %v301, 0
        %v514 = vsel %vm437, %v302, 0
        %v517 = vsel %vm437, %v303, 0
        %v520 = vsel %vm437, %v304, 0
        %v523 = vsel %vm437, %v305, 0
        %v526 = vsel %vm437, %v306, 0
        %v529 = vsel %vm437, %v307, 0
        %v532 = vsel %vm437, %v308, 0
        %v535 = vsel %vm437, %v309, 0
        %v538 = vsel %vm437, %v310, 0
        %v541 = vsel %vm437, %v311, 0
        %v544 = vsel %vm437, %v312, 0
        %v547 = vsel %vm437, %v313, 0
        %v550 = vsel %vm437, %v314, 0
        %v553 = vsel %vm437, %v315, 0
        %v556 = vsel %vm437, %v316, 0
        %v559 = vsel %vm437, %v317, 0
        %v562 = vsel %vm437, %v318, 0
        %v565 = vsel %vm437, %v319, 0
        %v568 = vsel %vm437, %v320, 0
        %v571 = vsel %vm437, %v321, 0
        %v574 = vsel %vm437, %v322, 0
        %v577 = vsel %vm437, %v323, 0
        %v580 = vsel %vm437, %v324, 0
        %v583 = vsel %vm437, %v325, 0
        %v586 = vsel %vm437, %v326, 0
        %v589 = vsel %vm437, %v327, 0
        %v592 = vsel %vm437, %v328, 0
        %v595 = vsel %vm437, %v329, 0
        %v598 = vsel %vm437, %v330, 0
        %v601 = vsel %vm437, %v331, 0
        %v604 = vsel %vm437, %v332, 0
        %v607 = vsel %vm437, %v333, 0
        %v610 = vsel %vm437, %v334, 0
        %v613 = vsel %vm437, %v335, 0
        %v616 = vsel %vm437, %v336, 0
        %v619 = vsel %vm437, %v337, 0
        %v622 = vsel %vm437, %v338, 0
        %v625 = vsel %vm437, %v339, 0
        %v628 = vsel %vm437, %v340, 0
        %v631 = vsel %vm437, %v341, 0
        %v634 = vsel %vm437, %v342, 0
        %v637 = vsel %vm437, %v343, 0
        %v640 = vsel %vm437, %v344, 0
        %v643 = vsel %vm437, %v345, 0
        %v646 = vsel %vm437, %v346, 0
        %v649 = vsel %vm437, %v347, 0
        %v652 = vsel %vm437, %v348, 0
        %v655 = vsel %vm437, %v349, 0
        %v658 = vsel %vm437, %v350, 0
        %v661 = vsel %vm437, %v351, 0
        %v664 = vsel %vm437, %v352, 0
        %v667 = vsel %vm437, %v353, 0
        %v670 = vsel %vm437, %v354, 0
        %v673 = vsel %vm437, %v355, 0
        %v676 = vsel %vm437, %v356, 0
        %v679 = vsel %vm437, %v357, 0
        %v682 = vsel %vm437, %v358, 0
        %v685 = vsel %vm437, %v359, 0
        %v688 = vsel %vm437, %v360, 0
        %v691 = vsel %vm437, %v361, 0
        %v694 = vsel %vm437, %v362, 0
        %v697 = vsel %vm437, %v363, 0
        %v700 = vsel %vm437, %v364, 0
        %v703 = vsel %vm437, %v365, 0
        %v706 = vsel %vm437, %v366, 0
        %v709 = vsel %vm437, %v367, 0
        %v712 = vsel %vm437, %v368, 0
        %v715 = vsel %vm437, %v369, 0
        %v718 = vsel %vm437, %v370, 0
        %v721 = vsel %vm437, %v371, 0
        %v724 = vsel %vm437, %v372, 0
        %v727 = vsel %vm437, %v373, 0
        %v730 = vsel %vm437, %v374, 0
        %v733 = vsel %vm437, %v375, 0
        %v736 = vsel %vm437, %v376, 0
        %v739 = vsel %vm437, %v377, 0
        %v742 = vsel %vm437, %v378, 0
        %v745 = vsel %vm437, %v379, 0
        %v748 = vsel %vm437, %v380, 0
        %v751 = vsel %vm437, %v381, 0
        %v754 = vsel %vm437, %v382, 0
        %v757 = vsel %vm437, %v383, 0
        %v760 = vsel %vm437, %v384, 0
        %v763 = vsel %vm437, %v385, 0
        %v766 = vsel %vm437, %v386, 0
        %v769 = vsel %vm437, %v387, 0
        %v772 = vsel %vm437, %v388, 0
        %v775 = vsel %vm437, %v389, 0
        %v778 = vsel %vm437, %v390, 0
        %v781 = vsel %vm437, %v391, 0
        %v784 = vsel %vm437, %v392, 0
        %v787 = vsel %vm437, %v393, 0
        %v790 = vsel %vm437, %v394, 0
        %v793 = vsel %vm437, %v395, 0
        %v796 = vsel %vm437, %v396, 0
        %v799 = vsel %vm437, %v397, 0
        %v802 = vsel %vm437, %v398, 0
        %v805 = vsel %vm437, %v399, 0
        %v808 = vsel %vm437, %v400, 0
        %v811 = vsel %vm437, %v401, 0
        %v814 = vsel %vm437, %v402, 0
        %v817 = vsel %vm437, %v403, 0
        %v820 = vsel %vm437, %v404, 0
        %v823 = vsel %vm437, %v405, 0
        %v826 = vsel %vm437, %v406, 0
        %v829 = vsel %vm437, %v407, 0
        %v832 = vsel %vm437, %v408, 0
        %834 = vmatprep.subr.mxu0 0.0
        %835 = vmatpush1.xpose.msra.mxu0 %v496
        %836 = vmatprep.subr.mxu0 0.0
        %837 = vmatpush1.xpose.msra.mxu0 %v493
        %838 = vmatprep.subr.mxu0 0.0
        %839 = vmatpush1.xpose.msra.mxu0 %v490
        %840 = vmatprep.subr.mxu0 0.0
        %841 = vmatpush1.xpose.msra.mxu0 %v487
        %842 = vmatprep.subr.mxu0 0.0
        %843 = vmatpush1.xpose.msra.mxu0 %v484
        %844 = vmatprep.subr.mxu0 0.0
        %845 = vmatpush1.xpose.msra.mxu0 %v481
        %846 = vmatprep.subr.mxu0 0.0
        %847 = vmatpush1.xpose.msra.mxu0 %v478
        %848 = vmatprep.subr.mxu0 0.0
        %849 = vmatpush1.xpose.msra.mxu0 %v475
        %850 = vmatprep.subr.mxu0 0.0
        %851 = vmatpush1.xpose.msra.mxu0 %v472
        %852 = vmatprep.subr.mxu0 0.0
        %853 = vmatpush1.xpose.msra.mxu0 %v469
        %854 = vmatprep.subr.mxu0 0.0
        %855 = vmatpush1.xpose.msra.mxu0 %v466
        %856 = vmatprep.subr.mxu0 0.0
        %857 = vmatpush1.xpose.msra.mxu0 %v463
        %858 = vmatprep.subr.mxu0 0.0
        %859 = vmatpush1.xpose.msra.mxu0 %v460
        %860 = vmatprep.subr.mxu0 0.0
        %861 = vmatpush1.xpose.msra.mxu0 %v457
        %862 = vmatprep.subr.mxu0 0.0
        %863 = vmatpush1.xpose.msra.mxu0 %v454
        %864 = vmatprep.subr.mxu0 0.0
        %865 = vmatpush1.xpose.msra.mxu0 %v451
        %866 = vmatprep.subr.mxu0 0.0
        %867 = vmatpush2.xpose.msra.mxu0 %v544
        %868 = vmatprep.subr.mxu0 0.0
        %869 = vmatpush2.xpose.msra.mxu0 %v541
        %870 = vmatprep.subr.mxu0 0.0
        %871 = vmatpush2.xpose.msra.mxu0 %v538
        %872 = vmatprep.subr.mxu0 0.0
        %873 = vmatpush2.xpose.msra.mxu0 %v535
        %874 = vmatprep.subr.mxu0 0.0
        %875 = vmatpush2.xpose.msra.mxu0 %v532
        %876 = vmatprep.subr.mxu0 0.0
        %877 = vmatpush2.xpose.msra.mxu0 %v529
        %878 = vmatprep.subr.mxu0 0.0
        %879 = vmatpush2.xpose.msra.mxu0 %v526
        %880 = vmatprep.subr.mxu0 0.0
        %881 = vmatpush2.xpose.msra.mxu0 %v523
        %882 = vmatprep.subr.mxu0 0.0
        %883 = vmatpush2.xpose.msra.mxu0 %v520
        %884 = vmatprep.subr.mxu0 0.0
        %885 = vmatpush2.xpose.msra.mxu0 %v517
        %886 = vmatprep.subr.mxu0 0.0
        %887 = vmatpush2.xpose.msra.mxu0 %v514
        %888 = vmatprep.subr.mxu0 0.0
        %889 = vmatpush2.xpose.msra.mxu0 %v511
        %890 = vmatprep.subr.mxu0 0.0
        %891 = vmatpush2.xpose.msra.mxu0 %v508
        %892 = vmatprep.subr.mxu0 0.0
        %893 = vmatpush2.xpose.msra.mxu0 %v505
        %894 = vmatprep.subr.mxu0 0.0
        %895 = vmatpush2.xpose.msra.mxu0 %v502
        %896 = vmatprep.subr.mxu0 0.0
        %897 = vmatpush2.xpose.msra.mxu0 %v499
        %898 = vmatprep.mubr.f32.mxu0 0.0
        %899 = vmatmul.mubr.f32.gmra.mxu0 %v439
        %v900 = vpop.f32.mrf.mxu0
        %v901 = vadd.f32 %v420, %v900
        %v902 = vpop.f32.mrf.mxu0
        %v903 = vadd.f32 %v420, %v902
        %904 = vmatprep.mubr.f32.mxu0 0.0
        %905 = vmatmul.mubr.f32.gmra.mxu0 %v442
        %v906 = vpop.f32.mrf.mxu0
        %v907 = vadd.f32 %v425, %v906
        %v908 = vpop.f32.mrf.mxu0
        %v909 = vadd.f32 %v425, %v908
        %910 = vmatprep.mubr.f32.mxu0 0.0
        %911 = vmatmul.mubr.f32.gmra.mxu0 %v445
        %v912 = vpop.f32.mrf.mxu0
        %v913 = vadd.f32 %v430, %v912
        %v914 = vpop.f32.mrf.mxu0
        %v915 = vadd.f32 %v430, %v914
        %916 = vmatprep.mubr.f32.mxu0 0.0
        %917 = vmatmul.mubr.f32.gmra.mxu0 %v448
        %v918 = vpop.f32.mrf.mxu0
        %v919 = vadd.f32 %v435, %v918
        %v920 = vpop.f32.mrf.mxu0
        %v921 = vadd.f32 %v435, %v920
        %922 = vdwg.mxu0
        %923 = vmatprep.subr.mxu0 0.0
        %924 = vmatpush1.xpose.msra.mxu0 %v592
        %925 = vmatprep.subr.mxu0 0.0
        %926 = vmatpush1.xpose.msra.mxu0 %v589
        %927 = vmatprep.subr.mxu0 0.0
        %928 = vmatpush1.xpose.msra.mxu0 %v586
        %929 = vmatprep.subr.mxu0 0.0
        %930 = vmatpush1.xpose.msra.mxu0 %v583
        %931 = vmatprep.subr.mxu0 0.0
        %932 = vmatpush1.xpose.msra.mxu0 %v580
        %933 = vmatprep.subr.mxu0 0.0
        %934 = vmatpush1.xpose.msra.mxu0 %v577
        %935 = vmatprep.subr.mxu0 0.0
        %936 = vmatpush1.xpose.msra.mxu0 %v574
        %937 = vmatprep.subr.mxu0 0.0
        %938 = vmatpush1.xpose.msra.mxu0 %v571
        %939 = vmatprep.subr.mxu0 0.0
        %940 = vmatpush1.xpose.msra.mxu0 %v568
        %941 = vmatprep.subr.mxu0 0.0
        %942 = vmatpush1.xpose.msra.mxu0 %v565
        %943 = vmatprep.subr.mxu0 0.0
        %944 = vmatpush1.xpose.msra.mxu0 %v562
        %945 = vmatprep.subr.mxu0 0.0
        %946 = vmatpush1.xpose.msra.mxu0 %v559
        %947 = vmatprep.subr.mxu0 0.0
        %948 = vmatpush1.xpose.msra.mxu0 %v556
        %949 = vmatprep.subr.mxu0 0.0
        %950 = vmatpush1.xpose.msra.mxu0 %v553
        %951 = vmatprep.subr.mxu0 0.0
        %952 = vmatpush1.xpose.msra.mxu0 %v550
        %953 = vmatprep.subr.mxu0 0.0
        %954 = vmatpush1.xpose.msra.mxu0 %v547
        %955 = vmatprep.subr.mxu0 0.0
        %956 = vmatpush2.xpose.msra.mxu0 %v640
        %957 = vmatprep.subr.mxu0 0.0
        %958 = vmatpush2.xpose.msra.mxu0 %v637
        %959 = vmatprep.subr.mxu0 0.0
        %960 = vmatpush2.xpose.msra.mxu0 %v634
        %961 = vmatprep.subr.mxu0 0.0
        %962 = vmatpush2.xpose.msra.mxu0 %v631
        %963 = vmatprep.subr.mxu0 0.0
        %964 = vmatpush2.xpose.msra.mxu0 %v628
        %965 = vmatprep.subr.mxu0 0.0
        %966 = vmatpush2.xpose.msra.mxu0 %v625
        %967 = vmatprep.subr.mxu0 0.0
        %968 = vmatpush2.xpose.msra.mxu0 %v622
        %969 = vmatprep.subr.mxu0 0.0
        %970 = vmatpush2.xpose.msra.mxu0 %v619
        %971 = vmatprep.subr.mxu0 0.0
        %972 = vmatpush2.xpose.msra.mxu0 %v616
        %973 = vmatprep.subr.mxu0 0.0
        %974 = vmatpush2.xpose.msra.mxu0 %v613
        %975 = vmatprep.subr.mxu0 0.0
        %976 = vmatpush2.xpose.msra.mxu0 %v610
        %977 = vmatprep.subr.mxu0 0.0
        %978 = vmatpush2.xpose.msra.mxu0 %v607
        %979 = vmatprep.subr.mxu0 0.0
        %980 = vmatpush2.xpose.msra.mxu0 %v604
        %981 = vmatprep.subr.mxu0 0.0
        %982 = vmatpush2.xpose.msra.mxu0 %v601
        %983 = vmatprep.subr.mxu0 0.0
        %984 = vmatpush2.xpose.msra.mxu0 %v598
        %985 = vmatprep.subr.mxu0 0.0
        %986 = vmatpush2.xpose.msra.mxu0 %v595
        %987 = vmatprep.mubr.f32.mxu0 0.0
        %988 = vmatmul.mubr.f32.gmra.mxu0 %v439
        %v989 = vpop.f32.mrf.mxu0
        %v990 = vadd.f32 %v420, %v989
        %v991 = vpop.f32.mrf.mxu0
        %v992 = vadd.f32 %v420, %v991
        %993 = vmatprep.mubr.f32.mxu0 0.0
        %994 = vmatmul.mubr.f32.gmra.mxu0 %v442
        %v995 = vpop.f32.mrf.mxu0
        %v996 = vadd.f32 %v425, %v995
        %v997 = vpop.f32.mrf.mxu0
        %v998 = vadd.f32 %v425, %v997
        %999 = vmatprep.mubr.f32.mxu0 0.0
        %1000 = vmatmul.mubr.f32.gmra.mxu0 %v445
        %v1001 = vpop.f32.mrf.mxu0
        %v1002 = vadd.f32 %v430, %v1001
        %v1003 = vpop.f32.mrf.mxu0
        %v1004 = vadd.f32 %v430, %v1003
        %1005 = vmatprep.mubr.f32.mxu0 0.0
        %1006 = vmatmul.mubr.f32.gmra.mxu0 %v448
        %v1007 = vpop.f32.mrf.mxu0
        %v1008 = vadd.f32 %v435, %v1007
        %v1009 = vpop.f32.mrf.mxu0
        %v1010 = vadd.f32 %v435, %v1009
        %1011 = vdwg.mxu0
        %1012 = vmatprep.subr.mxu0 0.0
        %1013 = vmatpush1.xpose.msra.mxu0 %v688
        %1014 = vmatprep.subr.mxu0 0.0
        %1015 = vmatpush1.xpose.msra.mxu0 %v685
        %1016 = vmatprep.subr.mxu0 0.0
        %1017 = vmatpush1.xpose.msra.mxu0 %v682
        %1018 = vmatprep.subr.mxu0 0.0
        %1019 = vmatpush1.xpose.msra.mxu0 %v679
        %1020 = vmatprep.subr.mxu0 0.0
        %1021 = vmatpush1.xpose.msra.mxu0 %v676
        %1022 = vmatprep.subr.mxu0 0.0
        %1023 = vmatpush1.xpose.msra.mxu0 %v673
        %1024 = vmatprep.subr.mxu0 0.0
        %1025 = vmatpush1.xpose.msra.mxu0 %v670
        %1026 = vmatprep.subr.mxu0 0.0
        %1027 = vmatpush1.xpose.msra.mxu0 %v667
        %1028 = vmatprep.subr.mxu0 0.0
        %1029 = vmatpush1.xpose.msra.mxu0 %v664
        %1030 = vmatprep.subr.mxu0 0.0
        %1031 = vmatpush1.xpose.msra.mxu0 %v661
        %1032 = vmatprep.subr.mxu0 0.0
        %1033 = vmatpush1.xpose.msra.mxu0 %v658
        %1034 = vmatprep.subr.mxu0 0.0
        %1035 = vmatpush1.xpose.msra.mxu0 %v655
        %1036 = vmatprep.subr.mxu0 0.0
        %1037 = vmatpush1.xpose.msra.mxu0 %v652
        %1038 = vmatprep.subr.mxu0 0.0
        %1039 = vmatpush1.xpose.msra.mxu0 %v649
        %1040 = vmatprep.subr.mxu0 0.0
        %1041 = vmatpush1.xpose.msra.mxu0 %v646
        %1042 = vmatprep.subr.mxu0 0.0
        %1043 = vmatpush1.xpose.msra.mxu0 %v643
        %1044 = vmatprep.subr.mxu0 0.0
        %1045 = vmatpush2.xpose.msra.mxu0 %v736
        %1046 = vmatprep.subr.mxu0 0.0
        %1047 = vmatpush2.xpose.msra.mxu0 %v733
        %1048 = vmatprep.subr.mxu0 0.0
        %1049 = vmatpush2.xpose.msra.mxu0 %v730
        %1050 = vmatprep.subr.mxu0 0.0
        %1051 = vmatpush2.xpose.msra.mxu0 %v727
        %1052 = vmatprep.subr.mxu0 0.0
        %1053 = vmatpush2.xpose.msra.mxu0 %v724
        %1054 = vmatprep.subr.mxu0 0.0
        %1055 = vmatpush2.xpose.msra.mxu0 %v721
        %1056 = vmatprep.subr.mxu0 0.0
        %1057 = vmatpush2.xpose.msra.mxu0 %v718
        %1058 = vmatprep.subr.mxu0 0.0
        %1059 = vmatpush2.xpose.msra.mxu0 %v715
        %1060 = vmatprep.subr.mxu0 0.0
        %1061 = vmatpush2.xpose.msra.mxu0 %v712
        %1062 = vmatprep.subr.mxu0 0.0
        %1063 = vmatpush2.xpose.msra.mxu0 %v709
        %1064 = vmatprep.subr.mxu0 0.0
        %1065 = vmatpush2.xpose.msra.mxu0 %v706
        %1066 = vmatprep.subr.mxu0 0.0
        %1067 = vmatpush2.xpose.msra.mxu0 %v703
        %1068 = vmatprep.subr.mxu0 0.0
        %1069 = vmatpush2.xpose.msra.mxu0 %v700
        %1070 = vmatprep.subr.mxu0 0.0
        %1071 = vmatpush2.xpose.msra.mxu0 %v697
        %1072 = vmatprep.subr.mxu0 0.0
        %1073 = vmatpush2.xpose.msra.mxu0 %v694
        %1074 = vmatprep.subr.mxu0 0.0
        %1075 = vmatpush2.xpose.msra.mxu0 %v691
        %1076 = vmatprep.mubr.f32.mxu0 0.0
        %1077 = vmatmul.mubr.f32.gmra.mxu0 %v439
        %v1078 = vpop.f32.mrf.mxu0
        %v1079 = vadd.f32 %v420, %v1078
        %v1080 = vpop.f32.mrf.mxu0
        %v1081 = vadd.f32 %v420, %v1080
        %1082 = vmatprep.mubr.f32.mxu0 0.0
        %1083 = vmatmul.mubr.f32.gmra.mxu0 %v442
        %v1084 = vpop.f32.mrf.mxu0
        %v1085 = vadd.f32 %v425, %v1084
        %v1086 = vpop.f32.mrf.mxu0
        %v1087 = vadd.f32 %v425, %v1086
        %1088 = vmatprep.mubr.f32.mxu0 0.0
        %1089 = vmatmul.mubr.f32.gmra.mxu0 %v445
        %v1090 = vpop.f32.mrf.mxu0
        %v1091 = vadd.f32 %v430, %v1090
        %v1092 = vpop.f32.mrf.mxu0
        %v1093 = vadd.f32 %v430, %v1092
        %1094 = vmatprep.mubr.f32.mxu0 0.0
        %1095 = vmatmul.mubr.f32.gmra.mxu0 %v448
        %v1096 = vpop.f32.mrf.mxu0
        %v1097 = vadd.f32 %v435, %v1096
        %v1098 = vpop.f32.mrf.mxu0
        %v1099 = vadd.f32 %v435, %v1098
        %1100 = vdwg.mxu0
        %1101 = vmatprep.subr.mxu0 0.0
        %1102 = vmatpush1.xpose.msra.mxu0 %v784
        %1103 = vmatprep.subr.mxu0 0.0
        %1104 = vmatpush1.xpose.msra.mxu0 %v781
        %1105 = vmatprep.subr.mxu0 0.0
        %1106 = vmatpush1.xpose.msra.mxu0 %v778
        %1107 = vmatprep.subr.mxu0 0.0
        %1108 = vmatpush1.xpose.msra.mxu0 %v775
        %1109 = vmatprep.subr.mxu0 0.0
        %1110 = vmatpush1.xpose.msra.mxu0 %v772
        %1111 = vmatprep.subr.mxu0 0.0
        %1112 = vmatpush1.xpose.msra.mxu0 %v769
        %1113 = vmatprep.subr.mxu0 0.0
        %1114 = vmatpush1.xpose.msra.mxu0 %v766
        %1115 = vmatprep.subr.mxu0 0.0
        %1116 = vmatpush1.xpose.msra.mxu0 %v763
        %1117 = vmatprep.subr.mxu0 0.0
        %1118 = vmatpush1.xpose.msra.mxu0 %v760
        %1119 = vmatprep.subr.mxu0 0.0
        %1120 = vmatpush1.xpose.msra.mxu0 %v757
        %1121 = vmatprep.subr.mxu0 0.0
        %1122 = vmatpush1.xpose.msra.mxu0 %v754
        %1123 = vmatprep.subr.mxu0 0.0
        %1124 = vmatpush1.xpose.msra.mxu0 %v751
        %1125 = vmatprep.subr.mxu0 0.0
        %1126 = vmatpush1.xpose.msra.mxu0 %v748
        %1127 = vmatprep.subr.mxu0 0.0
        %1128 = vmatpush1.xpose.msra.mxu0 %v745
        %1129 = vmatprep.subr.mxu0 0.0
        %1130 = vmatpush1.xpose.msra.mxu0 %v742
        %1131 = vmatprep.subr.mxu0 0.0
        %1132 = vmatpush1.xpose.msra.mxu0 %v739
        %1133 = vmatprep.subr.mxu0 0.0
        %1134 = vmatpush2.xpose.msra.mxu0 %v832
        %1135 = vmatprep.subr.mxu0 0.0
        %1136 = vmatpush2.xpose.msra.mxu0 %v829
        %1137 = vmatprep.subr.mxu0 0.0
        %1138 = vmatpush2.xpose.msra.mxu0 %v826
        %1139 = vmatprep.subr.mxu0 0.0
        %1140 = vmatpush2.xpose.msra.mxu0 %v823
        %1141 = vmatprep.subr.mxu0 0.0
        %1142 = vmatpush2.xpose.msra.mxu0 %v820
        %1143 = vmatprep.subr.mxu0 0.0
        %1144 = vmatpush2.xpose.msra.mxu0 %v817
        %1145 = vmatprep.subr.mxu0 0.0
        %1146 = vmatpush2.xpose.msra.mxu0 %v814
        %1147 = vmatprep.subr.mxu0 0.0
        %1148 = vmatpush2.xpose.msra.mxu0 %v811
        %1149 = vmatprep.subr.mxu0 0.0
        %1150 = vmatpush2.xpose.msra.mxu0 %v808
        %1151 = vmatprep.subr.mxu0 0.0
        %1152 = vmatpush2.xpose.msra.mxu0 %v805
        %1153 = vmatprep.subr.mxu0 0.0
        %1154 = vmatpush2.xpose.msra.mxu0 %v802
        %1155 = vmatprep.subr.mxu0 0.0
        %1156 = vmatpush2.xpose.msra.mxu0 %v799
        %1157 = vmatprep.subr.mxu0 0.0
        %1158 = vmatpush2.xpose.msra.mxu0 %v796
        %1159 = vmatprep.subr.mxu0 0.0
        %1160 = vmatpush2.xpose.msra.mxu0 %v793
        %1161 = vmatprep.subr.mxu0 0.0
        %1162 = vmatpush2.xpose.msra.mxu0 %v790
        %1163 = vmatprep.subr.mxu0 0.0
        %1164 = vmatpush2.xpose.msra.mxu0 %v787
        %1165 = vmatprep.mubr.f32.mxu0 0.0
        %1166 = vmatmul.mubr.f32.gmra.mxu0 %v439
        %v1167 = vpop.f32.mrf.mxu0
        %v1168 = vadd.f32 %v420, %v1167
        %v1169 = vpop.f32.mrf.mxu0
        %v1170 = vadd.f32 %v420, %v1169
        %1171 = vmatprep.mubr.f32.mxu0 0.0
        %1172 = vmatmul.mubr.f32.gmra.mxu0 %v442
        %v1173 = vpop.f32.mrf.mxu0
        %v1174 = vadd.f32 %v425, %v1173
        %v1175 = vpop.f32.mrf.mxu0
        %v1176 = vadd.f32 %v425, %v1175
        %1177 = vmatprep.mubr.f32.mxu0 0.0
        %1178 = vmatmul.mubr.f32.gmra.mxu0 %v445
        %v1179 = vpop.f32.mrf.mxu0
        %v1180 = vadd.f32 %v430, %v1179
        %v1181 = vpop.f32.mrf.mxu0
        %v1182 = vadd.f32 %v430, %v1181
        %1183 = vmatprep.mubr.f32.mxu0 0.0
        %1184 = vmatmul.mubr.f32.gmra.mxu0 %v448
        %v1185 = vpop.f32.mrf.mxu0
        %v1186 = vadd.f32 %v435, %v1185
        %v1187 = vpop.f32.mrf.mxu0
        %v1188 = vadd.f32 %v435, %v1187
        %1189 = vdwg.mxu0
        %vm1190 = vcmp.gt.f32.partialorder %v901, 0.0
        %vm1191 = vcmp.gt.f32.partialorder %v903, 0.0
        %vm1192 = vcmp.gt.f32.partialorder %v990, 0.0
        %vm1193 = vcmp.gt.f32.partialorder %v992, 0.0
        %vm1194 = vcmp.gt.f32.partialorder %v1079, 0.0
        %vm1195 = vcmp.gt.f32.partialorder %v1081, 0.0
        %vm1196 = vcmp.gt.f32.partialorder %v1168, 0.0
        %vm1197 = vcmp.gt.f32.partialorder %v1170, 0.0
        %vm1198 = vcmp.gt.f32.partialorder %v907, 0.0
        %vm1199 = vcmp.gt.f32.partialorder %v909, 0.0
        %vm1200 = vcmp.gt.f32.partialorder %v996, 0.0
        %vm1201 = vcmp.gt.f32.partialorder %v998, 0.0
        %vm1202 = vcmp.gt.f32.partialorder %v1085, 0.0
        %vm1203 = vcmp.gt.f32.partialorder %v1087, 0.0
        %vm1204 = vcmp.gt.f32.partialorder %v1174, 0.0
        %vm1205 = vcmp.gt.f32.partialorder %v1176, 0.0
        %vm1206 = vcmp.gt.f32.partialorder %v913, 0.0
        %vm1207 = vcmp.gt.f32.partialorder %v915, 0.0
        %vm1208 = vcmp.gt.f32.partialorder %v1002, 0.0
        %vm1209 = vcmp.gt.f32.partialorder %v1004, 0.0
        %vm1210 = vcmp.gt.f32.partialorder %v1091, 0.0
        %vm1211 = vcmp.gt.f32.partialorder %v1093, 0.0
        %vm1212 = vcmp.gt.f32.partialorder %v1180, 0.0
        %vm1213 = vcmp.gt.f32.partialorder %v1182, 0.0
        %vm1214 = vcmp.gt.f32.partialorder %v919, 0.0
        %vm1215 = vcmp.gt.f32.partialorder %v921, 0.0
        %vm1216 = vcmp.gt.f32.partialorder %v1008, 0.0
        %vm1217 = vcmp.gt.f32.partialorder %v1010, 0.0
        %vm1218 = vcmp.gt.f32.partialorder %v1097, 0.0
        %vm1219 = vcmp.gt.f32.partialorder %v1099, 0.0
        %vm1220 = vcmp.gt.f32.partialorder %v1186, 0.0
        %vm1221 = vcmp.gt.f32.partialorder %v1188, 0.0
        %v1222 = vmul.f32 %v901, 1.442695
        %v1223 = vpow.pop %v1222
        %v1224 = vmul.f32 %v903, 1.442695
        %v1225 = vpow.pop %v1224
        %v1226 = vmul.f32 %v990, 1.442695
        %v1227 = vpow.pop %v1226
        %v1228 = vmul.f32 %v992, 1.442695
        %v1229 = vpow.pop %v1228
        %v1230 = vmul.f32 %v1079, 1.442695
        %v1231 = vpow.pop %v1230
        %v1232 = vmul.f32 %v1081, 1.442695
        %v1233 = vpow.pop %v1232
        %v1234 = vmul.f32 %v1168, 1.442695
        %v1235 = vpow.pop %v1234
        %v1236 = vmul.f32 %v1170, 1.442695
        %v1237 = vpow.pop %v1236
        %v1238 = vmul.f32 %v907, 1.442695
        %v1239 = vpow.pop %v1238
        %v1240 = vmul.f32 %v909, 1.442695
        %v1241 = vpow.pop %v1240
        %v1242 = vmul.f32 %v996, 1.442695
        %v1243 = vpow.pop %v1242
        %v1244 = vmul.f32 %v998, 1.442695
        %v1245 = vpow.pop %v1244
        %v1246 = vmul.f32 %v1085, 1.442695
        %v1247 = vpow.pop %v1246
        %v1248 = vmul.f32 %v1087, 1.442695
        %v1249 = vpow.pop %v1248
        %v1250 = vmul.f32 %v1174, 1.442695
        %v1251 = vpow.pop %v1250
        %v1252 = vmul.f32 %v1176, 1.442695
        %v1253 = vpow.pop %v1252
        %v1254 = vmul.f32 %v913, 1.442695
        %v1255 = vpow.pop %v1254
        %v1256 = vmul.f32 %v915, 1.442695
        %v1257 = vpow.pop %v1256
        %v1258 = vmul.f32 %v1002, 1.442695
        %v1259 = vpow.pop %v1258
        %v1260 = vmul.f32 %v1004, 1.442695
        %v1261 = vpow.pop %v1260
        %v1262 = vmul.f32 %v1091, 1.442695
        %v1263 = vpow.pop %v1262
        %v1264 = vmul.f32 %v1093, 1.442695
        %v1265 = vpow.pop %v1264
        %v1266 = vmul.f32 %v1180, 1.442695
        %v1267 = vpow.pop %v1266
        %v1268 = vmul.f32 %v1182, 1.442695
        %v1269 = vpow.pop %v1268
        %v1270 = vmul.f32 %v919, 1.442695
        %v1271 = vpow.pop %v1270
        %v1272 = vmul.f32 %v921, 1.442695
        %v1273 = vpow.pop %v1272
        %v1274 = vmul.f32 %v1008, 1.442695
        %v1275 = vpow.pop %v1274
        %v1276 = vmul.f32 %v1010, 1.442695
        %v1277 = vpow.pop %v1276
        %v1278 = vmul.f32 %v1097, 1.442695
        %v1279 = vpow.pop %v1278
        %v1280 = vmul.f32 %v1099, 1.442695
        %v1281 = vpow.pop %v1280
        %v1282 = vmul.f32 %v1186, 1.442695
        %v1283 = vpow.pop %v1282
        %v1284 = vmul.f32 %v1188, 1.442695
        %v1285 = vpow.pop %v1284
        %v1286 = vsub.f32 %v1223, 1.0
        %v1287 = vsub.f32 %v1225, 1.0
        %v1288 = vsub.f32 %v1227, 1.0
        %v1289 = vsub.f32 %v1229, 1.0
        %v1290 = vsub.f32 %v1231, 1.0
        %v1291 = vsub.f32 %v1233, 1.0
        %v1292 = vsub.f32 %v1235, 1.0
        %v1293 = vsub.f32 %v1237, 1.0
        %v1294 = vsub.f32 %v1239, 1.0
        %v1295 = vsub.f32 %v1241, 1.0
        %v1296 = vsub.f32 %v1243, 1.0
        %v1297 = vsub.f32 %v1245, 1.0
        %v1298 = vsub.f32 %v1247, 1.0
        %v1299 = vsub.f32 %v1249, 1.0
        %v1300 = vsub.f32 %v1251, 1.0
        %v1301 = vsub.f32 %v1253, 1.0
        %v1302 = vsub.f32 %v1255, 1.0
        %v1303 = vsub.f32 %v1257, 1.0
        %v1304 = vsub.f32 %v1259, 1.0
        %v1305 = vsub.f32 %v1261, 1.0
        %v1306 = vsub.f32 %v1263, 1.0
        %v1307 = vsub.f32 %v1265, 1.0
        %v1308 = vsub.f32 %v1267, 1.0
        %v1309 = vsub.f32 %v1269, 1.0
        %v1310 = vsub.f32 %v1271, 1.0
        %v1311 = vsub.f32 %v1273, 1.0
        %v1312 = vsub.f32 %v1275, 1.0
        %v1313 = vsub.f32 %v1277, 1.0
        %v1314 = vsub.f32 %v1279, 1.0
        %v1315 = vsub.f32 %v1281, 1.0
        %v1316 = vsub.f32 %v1283, 1.0
        %v1317 = vsub.f32 %v1285, 1.0
        %v1318 = vmul.f32 %v1286, 1.6732632
        %v1319 = vmul.f32 %v1287, 1.6732632
        %v1320 = vmul.f32 %v1288, 1.6732632
        %v1321 = vmul.f32 %v1289, 1.6732632
        %v1322 = vmul.f32 %v1290, 1.6732632
        %v1323 = vmul.f32 %v1291, 1.6732632
        %v1324 = vmul.f32 %v1292, 1.6732632
        %v1325 = vmul.f32 %v1293, 1.6732632
        %v1326 = vmul.f32 %v1294, 1.6732632
        %v1327 = vmul.f32 %v1295, 1.6732632
        %v1328 = vmul.f32 %v1296, 1.6732632
        %v1329 = vmul.f32 %v1297, 1.6732632
        %v1330 = vmul.f32 %v1298, 1.6732632
        %v1331 = vmul.f32 %v1299, 1.6732632
        %v1332 = vmul.f32 %v1300, 1.6732632
        %v1333 = vmul.f32 %v1301, 1.6732632
        %v1334 = vmul.f32 %v1302, 1.6732632
        %v1335 = vmul.f32 %v1303, 1.6732632
        %v1336 = vmul.f32 %v1304, 1.6732632
        %v1337 = vmul.f32 %v1305, 1.6732632
        %v1338 = vmul.f32 %v1306, 1.6732632
        %v1339 = vmul.f32 %v1307, 1.6732632
        %v1340 = vmul.f32 %v1308, 1.6732632
        %v1341 = vmul.f32 %v1309, 1.6732632
        %v1342 = vmul.f32 %v1310, 1.6732632
        %v1343 = vmul.f32 %v1311, 1.6732632
        %v1344 = vmul.f32 %v1312, 1.6732632
        %v1345 = vmul.f32 %v1313, 1.6732632
        %v1346 = vmul.f32 %v1314, 1.6732632
        %v1347 = vmul.f32 %v1315, 1.6732632
        %v1348 = vmul.f32 %v1316, 1.6732632
        %v1349 = vmul.f32 %v1317, 1.6732632
        %v1350 = vsel %vm1190, %v901, %v1318
        %v1351 = vsel %vm1191, %v903, %v1319
        %v1352 = vsel %vm1192, %v990, %v1320
        %v1353 = vsel %vm1193, %v992, %v1321
        %v1354 = vsel %vm1194, %v1079, %v1322
        %v1355 = vsel %vm1195, %v1081, %v1323
        %v1356 = vsel %vm1196, %v1168, %v1324
        %v1357 = vsel %vm1197, %v1170, %v1325
        %v1358 = vsel %vm1198, %v907, %v1326
        %v1359 = vsel %vm1199, %v909, %v1327
        %v1360 = vsel %vm1200, %v996, %v1328
        %v1361 = vsel %vm1201, %v998, %v1329
        %v1362 = vsel %vm1202, %v1085, %v1330
        %v1363 = vsel %vm1203, %v1087, %v1331
        %v1364 = vsel %vm1204, %v1174, %v1332
        %v1365 = vsel %vm1205, %v1176, %v1333
        %v1366 = vsel %vm1206, %v913, %v1334
        %v1367 = vsel %vm1207, %v915, %v1335
        %v1368 = vsel %vm1208, %v1002, %v1336
        %v1369 = vsel %vm1209, %v1004, %v1337
        %v1370 = vsel %vm1210, %v1091, %v1338
        %v1371 = vsel %vm1211, %v1093, %v1339
        %v1372 = vsel %vm1212, %v1180, %v1340
        %v1373 = vsel %vm1213, %v1182, %v1341
        %v1374 = vsel %vm1214, %v919, %v1342
        %v1375 = vsel %vm1215, %v921, %v1343
        %v1376 = vsel %vm1216, %v1008, %v1344
        %v1377 = vsel %vm1217, %v1010, %v1345
        %v1378 = vsel %vm1218, %v1097, %v1346
        %v1379 = vsel %vm1219, %v1099, %v1347
        %v1380 = vsel %vm1220, %v1186, %v1348
        %v1381 = vsel %vm1221, %v1188, %v1349
        %v1382 = vmul.f32 %v1350, 1.050701
        %v1383 = vmul.f32 %v1351, 1.050701
        %v1384 = vmul.f32 %v1352, 1.050701
        %v1385 = vmul.f32 %v1353, 1.050701
        %v1386 = vmul.f32 %v1354, 1.050701
        %v1387 = vmul.f32 %v1355, 1.050701
        %v1388 = vmul.f32 %v1356, 1.050701
        %v1389 = vmul.f32 %v1357, 1.050701
        %v1390 = vmul.f32 %v1358, 1.050701
        %v1391 = vmul.f32 %v1359, 1.050701
        %v1392 = vmul.f32 %v1360, 1.050701
        %v1393 = vmul.f32 %v1361, 1.050701
        %v1394 = vmul.f32 %v1362, 1.050701
        %v1395 = vmul.f32 %v1363, 1.050701
        %v1396 = vmul.f32 %v1364, 1.050701
        %v1397 = vmul.f32 %v1365, 1.050701
        %v1398 = vmul.f32 %v1366, 1.050701
        %v1399 = vmul.f32 %v1367, 1.050701
        %v1400 = vmul.f32 %v1368, 1.050701
        %v1401 = vmul.f32 %v1369, 1.050701
        %v1402 = vmul.f32 %v1370, 1.050701
        %v1403 = vmul.f32 %v1371, 1.050701
        %v1404 = vmul.f32 %v1372, 1.050701
        %v1405 = vmul.f32 %v1373, 1.050701
        %v1406 = vmul.f32 %v1374, 1.050701
        %v1407 = vmul.f32 %v1375, 1.050701
        %v1408 = vmul.f32 %v1376, 1.050701
        %v1409 = vmul.f32 %v1377, 1.050701
        %v1410 = vmul.f32 %v1378, 1.050701
        %v1411 = vmul.f32 %v1379, 1.050701
        %v1412 = vmul.f32 %v1380, 1.050701
        %v1413 = vmul.f32 %v1381, 1.050701
        %v1414 = vld [vmem:[%s3] sm:$0xff]
        %v1415 = vld [vmem:[%s3 + $0x8] sm:$0xff]
        %v1416 = vld [vmem:[%s3 + $0x10] sm:$0xff]
        %v1417 = vld [vmem:[%s3 + $0x18] sm:$0xff]
        %v1418 = vld [vmem:[%s4] sm:$0xff]
        %v1419 = vld [vmem:[%s4 + $0x8] sm:$0xff]
        %v1420 = vld [vmem:[%s4 + $0x10] sm:$0xff]
        %v1421 = vld [vmem:[%s4 + $0x18] sm:$0xff]
        %1423 = vset.pattern.permute.xlu0 0
        %1424 = vperm.xlu0 %1423, %v1418
        %v1425 = vpop.permute.xlu0 %1424
        %1428 = vset.pattern.permute.xlu0 0
        %1429 = vperm.xlu0 %1428, %v1419
        %v1430 = vpop.permute.xlu0 %1429
        %1433 = vset.pattern.permute.xlu0 0
        %1434 = vperm.xlu0 %1433, %v1420
        %v1435 = vpop.permute.xlu0 %1434
        %1438 = vset.pattern.permute.xlu0 0
        %1439 = vperm.xlu0 %1438, %v1421
        %v1440 = vpop.permute.xlu0 %1439
        %vm1442 = vcmask 261120
        %v1444 = vsel %vm1442, %v1414, 0
        %v1447 = vsel %vm1442, %v1415, 0
        %v1450 = vsel %vm1442, %v1416, 0
        %v1453 = vsel %vm1442, %v1417, 0
        %1455 = vmatprep.subr.mxu0 0.0
        %1456 = vmatpush1.msra.mxu0 0.0
        %1457 = vmatprep.subr.mxu0 0.0
        %1458 = vmatpush1.msra.mxu0 0.0
        %1459 = vmatprep.subr.mxu0 0.0
        %1460 = vmatpush1.msra.mxu0 0.0
        %1461 = vmatprep.subr.mxu0 0.0
        %1462 = vmatpush1.msra.mxu0 0.0
        %1463 = vmatprep.subr.mxu0 0.0
        %1464 = vmatpush1.msra.mxu0 0.0
        %1465 = vmatprep.subr.mxu0 0.0
        %1466 = vmatpush1.msra.mxu0 0.0
        %1467 = vmatprep.subr.mxu0 0.0
        %1468 = vmatpush1.msra.mxu0 0.0
        %1469 = vmatprep.subr.mxu0 0.0
        %1470 = vmatpush1.msra.mxu0 0.0
        %1471 = vmatprep.subr.mxu0 0.0
        %1472 = vmatpush1.msra.mxu0 0.0
        %1473 = vmatprep.subr.mxu0 0.0
        %1474 = vmatpush1.msra.mxu0 0.0
        %1475 = vmatprep.subr.mxu0 0.0
        %1476 = vmatpush1.msra.mxu0 0.0
        %1477 = vmatprep.subr.mxu0 0.0
        %1478 = vmatpush1.msra.mxu0 0.0
        %1479 = vmatprep.subr.mxu0 %v1407
        %1480 = vmatpush1.msra.mxu0 %v1406
        %1481 = vmatprep.subr.mxu0 %v1399
        %1482 = vmatpush1.msra.mxu0 %v1398
        %1483 = vmatprep.subr.mxu0 %v1391
        %1484 = vmatpush1.msra.mxu0 %v1390
        %1485 = vmatprep.subr.mxu0 %v1383
        %1486 = vmatpush1.msra.mxu0 %v1382
        %1487 = vmatprep.subr.mxu0 0.0
        %1488 = vmatpush2.msra.mxu0 0.0
        %1489 = vmatprep.subr.mxu0 0.0
        %1490 = vmatpush2.msra.mxu0 0.0
        %1491 = vmatprep.subr.mxu0 0.0
        %1492 = vmatpush2.msra.mxu0 0.0
        %1493 = vmatprep.subr.mxu0 0.0
        %1494 = vmatpush2.msra.mxu0 0.0
        %1495 = vmatprep.subr.mxu0 0.0
        %1496 = vmatpush2.msra.mxu0 0.0
        %1497 = vmatprep.subr.mxu0 0.0
        %1498 = vmatpush2.msra.mxu0 0.0
        %1499 = vmatprep.subr.mxu0 0.0
        %1500 = vmatpush2.msra.mxu0 0.0
        %1501 = vmatprep.subr.mxu0 0.0
        %1502 = vmatpush2.msra.mxu0 0.0
        %1503 = vmatprep.subr.mxu0 0.0
        %1504 = vmatpush2.msra.mxu0 0.0
        %1505 = vmatprep.subr.mxu0 0.0
        %1506 = vmatpush2.msra.mxu0 0.0
        %1507 = vmatprep.subr.mxu0 0.0
        %1508 = vmatpush2.msra.mxu0 0.0
        %1509 = vmatprep.subr.mxu0 0.0
        %1510 = vmatpush2.msra.mxu0 0.0
        %1511 = vmatprep.subr.mxu0 0.0
        %1512 = vmatpush2.msra.mxu0 0.0
        %1513 = vmatprep.subr.mxu0 0.0
        %1514 = vmatpush2.msra.mxu0 0.0
        %1515 = vmatprep.subr.mxu0 0.0
        %1516 = vmatpush2.msra.mxu0 0.0
        %1517 = vmatprep.subr.mxu0 0.0
        %1518 = vmatpush2.msra.mxu0 0.0
        %1519 = vmatprep.mubr.f32.mxu0 0.0
        %1520 = vmatmul.mubr.f32.gmra.mxu0 %v1444
        %v1521 = vpop.f32.mrf.mxu0
        %v1522 = vadd.f32 %v1425, %v1521
        %v1523 = vpop.f32.mrf.mxu0
        %v1524 = vadd.f32 %v1425, %v1523
        %1525 = vmatprep.mubr.f32.mxu0 0.0
        %1526 = vmatmul.mubr.f32.gmra.mxu0 %v1447
        %v1527 = vpop.f32.mrf.mxu0
        %v1528 = vadd.f32 %v1430, %v1527
        %v1529 = vpop.f32.mrf.mxu0
        %v1530 = vadd.f32 %v1430, %v1529
        %1531 = vmatprep.mubr.f32.mxu0 0.0
        %1532 = vmatmul.mubr.f32.gmra.mxu0 %v1450
        %v1533 = vpop.f32.mrf.mxu0
        %v1534 = vadd.f32 %v1435, %v1533
        %v1535 = vpop.f32.mrf.mxu0
        %v1536 = vadd.f32 %v1435, %v1535
        %1537 = vmatprep.mubr.f32.mxu0 0.0
        %1538 = vmatmul.mubr.f32.gmra.mxu0 %v1453
        %v1539 = vpop.f32.mrf.mxu0
        %v1540 = vadd.f32 %v1440, %v1539
        %v1541 = vpop.f32.mrf.mxu0
        %v1542 = vadd.f32 %v1440, %v1541
        %1543 = vdwg.mxu0
        %1544 = vmatprep.subr.mxu0 0.0
        %1545 = vmatpush1.msra.mxu0 0.0
        %1546 = vmatprep.subr.mxu0 0.0
        %1547 = vmatpush1.msra.mxu0 0.0
        %1548 = vmatprep.subr.mxu0 0.0
        %1549 = vmatpush1.msra.mxu0 0.0
        %1550 = vmatprep.subr.mxu0 0.0
        %1551 = vmatpush1.msra.mxu0 0.0
        %1552 = vmatprep.subr.mxu0 0.0
        %1553 = vmatpush1.msra.mxu0 0.0
        %1554 = vmatprep.subr.mxu0 0.0
        %1555 = vmatpush1.msra.mxu0 0.0
        %1556 = vmatprep.subr.mxu0 0.0
        %1557 = vmatpush1.msra.mxu0 0.0
        %1558 = vmatprep.subr.mxu0 0.0
        %1559 = vmatpush1.msra.mxu0 0.0
        %1560 = vmatprep.subr.mxu0 0.0
        %1561 = vmatpush1.msra.mxu0 0.0
        %1562 = vmatprep.subr.mxu0 0.0
        %1563 = vmatpush1.msra.mxu0 0.0
        %1564 = vmatprep.subr.mxu0 0.0
        %1565 = vmatpush1.msra.mxu0 0.0
        %1566 = vmatprep.subr.mxu0 0.0
        %1567 = vmatpush1.msra.mxu0 0.0
        %1568 = vmatprep.subr.mxu0 %v1409
        %1569 = vmatpush1.msra.mxu0 %v1408
        %1570 = vmatprep.subr.mxu0 %v1401
        %1571 = vmatpush1.msra.mxu0 %v1400
        %1572 = vmatprep.subr.mxu0 %v1393
        %1573 = vmatpush1.msra.mxu0 %v1392
        %1574 = vmatprep.subr.mxu0 %v1385
        %1575 = vmatpush1.msra.mxu0 %v1384
        %1576 = vmatprep.subr.mxu0 0.0
        %1577 = vmatpush2.msra.mxu0 0.0
        %1578 = vmatprep.subr.mxu0 0.0
        %1579 = vmatpush2.msra.mxu0 0.0
        %1580 = vmatprep.subr.mxu0 0.0
        %1581 = vmatpush2.msra.mxu0 0.0
        %1582 = vmatprep.subr.mxu0 0.0
        %1583 = vmatpush2.msra.mxu0 0.0
        %1584 = vmatprep.subr.mxu0 0.0
        %1585 = vmatpush2.msra.mxu0 0.0
        %1586 = vmatprep.subr.mxu0 0.0
        %1587 = vmatpush2.msra.mxu0 0.0
        %1588 = vmatprep.subr.mxu0 0.0
        %1589 = vmatpush2.msra.mxu0 0.0
        %1590 = vmatprep.subr.mxu0 0.0
        %1591 = vmatpush2.msra.mxu0 0.0
        %1592 = vmatprep.subr.mxu0 0.0
        %1593 = vmatpush2.msra.mxu0 0.0
        %1594 = vmatprep.subr.mxu0 0.0
        %1595 = vmatpush2.msra.mxu0 0.0
        %1596 = vmatprep.subr.mxu0 0.0
        %1597 = vmatpush2.msra.mxu0 0.0
        %1598 = vmatprep.subr.mxu0 0.0
        %1599 = vmatpush2.msra.mxu0 0.0
        %1600 = vmatprep.subr.mxu0 0.0
        %1601 = vmatpush2.msra.mxu0 0.0
        %1602 = vmatprep.subr.mxu0 0.0
        %1603 = vmatpush2.msra.mxu0 0.0
        %1604 = vmatprep.subr.mxu0 0.0
        %1605 = vmatpush2.msra.mxu0 0.0
        %1606 = vmatprep.subr.mxu0 0.0
        %1607 = vmatpush2.msra.mxu0 0.0
        %1608 = vmatprep.mubr.f32.mxu0 0.0
        %1609 = vmatmul.mubr.f32.gmra.mxu0 %v1444
        %v1610 = vpop.f32.mrf.mxu0
        %v1611 = vadd.f32 %v1425, %v1610
        %v1612 = vpop.f32.mrf.mxu0
        %v1613 = vadd.f32 %v1425, %v1612
        %1614 = vmatprep.mubr.f32.mxu0 0.0
        %1615 = vmatmul.mubr.f32.gmra.mxu0 %v1447
        %v1616 = vpop.f32.mrf.mxu0
        %v1617 = vadd.f32 %v1430, %v1616
        %v1618 = vpop.f32.mrf.mxu0
        %v1619 = vadd.f32 %v1430, %v1618
        %1620 = vmatprep.mubr.f32.mxu0 0.0
        %1621 = vmatmul.mubr.f32.gmra.mxu0 %v1450
        %v1622 = vpop.f32.mrf.mxu0
        %v1623 = vadd.f32 %v1435, %v1622
        %v1624 = vpop.f32.mrf.mxu0
        %v1625 = vadd.f32 %v1435, %v1624
        %1626 = vmatprep.mubr.f32.mxu0 0.0
        %1627 = vmatmul.mubr.f32.gmra.mxu0 %v1453
        %v1628 = vpop.f32.mrf.mxu0
        %v1629 = vadd.f32 %v1440, %v1628
        %v1630 = vpop.f32.mrf.mxu0
        %v1631 = vadd.f32 %v1440, %v1630
        %1632 = vdwg.mxu0
        %1633 = vmatprep.subr.mxu0 0.0
        %1634 = vmatpush1.msra.mxu0 0.0
        %1635 = vmatprep.subr.mxu0 0.0
        %1636 = vmatpush1.msra.mxu0 0.0
        %1637 = vmatprep.subr.mxu0 0.0
        %1638 = vmatpush1.msra.mxu0 0.0
        %1639 = vmatprep.subr.mxu0 0.0
        %1640 = vmatpush1.msra.mxu0 0.0
        %1641 = vmatprep.subr.mxu0 0.0
        %1642 = vmatpush1.msra.mxu0 0.0
        %1643 = vmatprep.subr.mxu0 0.0
        %1644 = vmatpush1.msra.mxu0 0.0
        %1645 = vmatprep.subr.mxu0 0.0
        %1646 = vmatpush1.msra.mxu0 0.0
        %1647 = vmatprep.subr.mxu0 0.0
        %1648 = vmatpush1.msra.mxu0 0.0
        %1649 = vmatprep.subr.mxu0 0.0
        %1650 = vmatpush1.msra.mxu0 0.0
        %1651 = vmatprep.subr.mxu0 0.0
        %1652 = vmatpush1.msra.mxu0 0.0
        %1653 = vmatprep.subr.mxu0 0.0
        %1654 = vmatpush1.msra.mxu0 0.0
        %1655 = vmatprep.subr.mxu0 0.0
        %1656 = vmatpush1.msra.mxu0 0.0
        %1657 = vmatprep.subr.mxu0 %v1411
        %1658 = vmatpush1.msra.mxu0 %v1410
        %1659 = vmatprep.subr.mxu0 %v1403
        %1660 = vmatpush1.msra.mxu0 %v1402
        %1661 = vmatprep.subr.mxu0 %v1395
        %1662 = vmatpush1.msra.mxu0 %v1394
        %1663 = vmatprep.subr.mxu0 %v1387
        %1664 = vmatpush1.msra.mxu0 %v1386
        %1665 = vmatprep.subr.mxu0 0.0
        %1666 = vmatpush2.msra.mxu0 0.0
        %1667 = vmatprep.subr.mxu0 0.0
        %1668 = vmatpush2.msra.mxu0 0.0
        %1669 = vmatprep.subr.mxu0 0.0
        %1670 = vmatpush2.msra.mxu0 0.0
        %1671 = vmatprep.subr.mxu0 0.0
        %1672 = vmatpush2.msra.mxu0 0.0
        %1673 = vmatprep.subr.mxu0 0.0
        %1674 = vmatpush2.msra.mxu0 0.0
        %1675 = vmatprep.subr.mxu0 0.0
        %1676 = vmatpush2.msra.mxu0 0.0
        %1677 = vmatprep.subr.mxu0 0.0
        %1678 = vmatpush2.msra.mxu0 0.0
        %1679 = vmatprep.subr.mxu0 0.0
        %1680 = vmatpush2.msra.mxu0 0.0
        %1681 = vmatprep.subr.mxu0 0.0
        %1682 = vmatpush2.msra.mxu0 0.0
        %1683 = vmatprep.subr.mxu0 0.0
        %1684 = vmatpush2.msra.mxu0 0.0
        %1685 = vmatprep.subr.mxu0 0.0
        %1686 = vmatpush2.msra.mxu0 0.0
        %1687 = vmatprep.subr.mxu0 0.0
        %1688 = vmatpush2.msra.mxu0 0.0
        %1689 = vmatprep.subr.mxu0 0.0
        %1690 = vmatpush2.msra.mxu0 0.0
        %1691 = vmatprep.subr.mxu0 0.0
        %1692 = vmatpush2.msra.mxu0 0.0
        %1693 = vmatprep.subr.mxu0 0.0
        %1694 = vmatpush2.msra.mxu0 0.0
        %1695 = vmatprep.subr.mxu0 0.0
        %1696 = vmatpush2.msra.mxu0 0.0
        %1697 = vmatprep.mubr.f32.mxu0 0.0
        %1698 = vmatmul.mubr.f32.gmra.mxu0 %v1444
        %v1699 = vpop.f32.mrf.mxu0
        %v1700 = vadd.f32 %v1425, %v1699
        %v1701 = vpop.f32.mrf.mxu0
        %v1702 = vadd.f32 %v1425, %v1701
        %1703 = vmatprep.mubr.f32.mxu0 0.0
        %1704 = vmatmul.mubr.f32.gmra.mxu0 %v1447
        %v1705 = vpop.f32.mrf.mxu0
        %v1706 = vadd.f32 %v1430, %v1705
        %v1707 = vpop.f32.mrf.mxu0
        %v1708 = vadd.f32 %v1430, %v1707
        %1709 = vmatprep.mubr.f32.mxu0 0.0
        %1710 = vmatmul.mubr.f32.gmra.mxu0 %v1450
        %v1711 = vpop.f32.mrf.mxu0
        %v1712 = vadd.f32 %v1435, %v1711
        %v1713 = vpop.f32.mrf.mxu0
        %v1714 = vadd.f32 %v1435, %v1713
        %1715 = vmatprep.mubr.f32.mxu0 0.0
        %1716 = vmatmul.mubr.f32.gmra.mxu0 %v1453
        %v1717 = vpop.f32.mrf.mxu0
        %v1718 = vadd.f32 %v1440, %v1717
        %v1719 = vpop.f32.mrf.mxu0
        %v1720 = vadd.f32 %v1440, %v1719
        %1721 = vdwg.mxu0
        %1722 = vmatprep.subr.mxu0 0.0
        %1723 = vmatpush1.msra.mxu0 0.0
        %1724 = vmatprep.subr.mxu0 0.0
        %1725 = vmatpush1.msra.mxu0 0.0
        %1726 = vmatprep.subr.mxu0 0.0
        %1727 = vmatpush1.msra.mxu0 0.0
        %1728 = vmatprep.subr.mxu0 0.0
        %1729 = vmatpush1.msra.mxu0 0.0
        %1730 = vmatprep.subr.mxu0 0.0
        %1731 = vmatpush1.msra.mxu0 0.0
        %1732 = vmatprep.subr.mxu0 0.0
        %1733 = vmatpush1.msra.mxu0 0.0
        %1734 = vmatprep.subr.mxu0 0.0
        %1735 = vmatpush1.msra.mxu0 0.0
        %1736 = vmatprep.subr.mxu0 0.0
        %1737 = vmatpush1.msra.mxu0 0.0
        %1738 = vmatprep.subr.mxu0 0.0
        %1739 = vmatpush1.msra.mxu0 0.0
        %1740 = vmatprep.subr.mxu0 0.0
        %1741 = vmatpush1.msra.mxu0 0.0
        %1742 = vmatprep.subr.mxu0 0.0
        %1743 = vmatpush1.msra.mxu0 0.0
        %1744 = vmatprep.subr.mxu0 0.0
        %1745 = vmatpush1.msra.mxu0 0.0
        %1746 = vmatprep.subr.mxu0 %v1413
        %1747 = vmatpush1.msra.mxu0 %v1412
        %1748 = vmatprep.subr.mxu0 %v1405
        %1749 = vmatpush1.msra.mxu0 %v1404
        %1750 = vmatprep.subr.mxu0 %v1397
        %1751 = vmatpush1.msra.mxu0 %v1396
        %1752 = vmatprep.subr.mxu0 %v1389
        %1753 = vmatpush1.msra.mxu0 %v1388
        %1754 = vmatprep.subr.mxu0 0.0
        %1755 = vmatpush2.msra.mxu0 0.0
        %1756 = vmatprep.subr.mxu0 0.0
        %1757 = vmatpush2.msra.mxu0 0.0
        %1758 = vmatprep.subr.mxu0 0.0
        %1759 = vmatpush2.msra.mxu0 0.0
        %1760 = vmatprep.subr.mxu0 0.0
        %1761 = vmatpush2.msra.mxu0 0.0
        %1762 = vmatprep.subr.mxu0 0.0
        %1763 = vmatpush2.msra.mxu0 0.0
        %1764 = vmatprep.subr.mxu0 0.0
        %1765 = vmatpush2.msra.mxu0 0.0
        %1766 = vmatprep.subr.mxu0 0.0
        %1767 = vmatpush2.msra.mxu0 0.0
        %1768 = vmatprep.subr.mxu0 0.0
        %1769 = vmatpush2.msra.mxu0 0.0
        %1770 = vmatprep.subr.mxu0 0.0
        %1771 = vmatpush2.msra.mxu0 0.0
        %1772 = vmatprep.subr.mxu0 0.0
        %1773 = vmatpush2.msra.mxu0 0.0
        %1774 = vmatprep.subr.mxu0 0.0
        %1775 = vmatpush2.msra.mxu0 0.0
        %1776 = vmatprep.subr.mxu0 0.0
        %1777 = vmatpush2.msra.mxu0 0.0
        %1778 = vmatprep.subr.mxu0 0.0
        %1779 = vmatpush2.msra.mxu0 0.0
        %1780 = vmatprep.subr.mxu0 0.0
        %1781 = vmatpush2.msra.mxu0 0.0
        %1782 = vmatprep.subr.mxu0 0.0
        %1783 = vmatpush2.msra.mxu0 0.0
        %1784 = vmatprep.subr.mxu0 0.0
        %1785 = vmatpush2.msra.mxu0 0.0
        %1786 = vmatprep.mubr.f32.mxu0 0.0
        %1787 = vmatmul.mubr.f32.gmra.mxu0 %v1444
        %v1788 = vpop.f32.mrf.mxu0
        %v1789 = vadd.f32 %v1425, %v1788
        %v1790 = vpop.f32.mrf.mxu0
        %v1791 = vadd.f32 %v1425, %v1790
        %1792 = vmatprep.mubr.f32.mxu0 0.0
        %1793 = vmatmul.mubr.f32.gmra.mxu0 %v1447
        %v1794 = vpop.f32.mrf.mxu0
        %v1795 = vadd.f32 %v1430, %v1794
        %v1796 = vpop.f32.mrf.mxu0
        %v1797 = vadd.f32 %v1430, %v1796
        %1798 = vmatprep.mubr.f32.mxu0 0.0
        %1799 = vmatmul.mubr.f32.gmra.mxu0 %v1450
        %v1800 = vpop.f32.mrf.mxu0
        %v1801 = vadd.f32 %v1435, %v1800
        %v1802 = vpop.f32.mrf.mxu0
        %v1803 = vadd.f32 %v1435, %v1802
        %1804 = vmatprep.mubr.f32.mxu0 0.0
        %1805 = vmatmul.mubr.f32.gmra.mxu0 %v1453
        %v1806 = vpop.f32.mrf.mxu0
        %v1807 = vadd.f32 %v1440, %v1806
        %v1808 = vpop.f32.mrf.mxu0
        %v1809 = vadd.f32 %v1440, %v1808
        %1810 = vdwg.mxu0
        %vm1811 = vcmp.gt.f32.partialorder %v1522, 0.0
        %vm1812 = vcmp.gt.f32.partialorder %v1524, 0.0
        %vm1813 = vcmp.gt.f32.partialorder %v1611, 0.0
        %vm1814 = vcmp.gt.f32.partialorder %v1613, 0.0
        %vm1815 = vcmp.gt.f32.partialorder %v1700, 0.0
        %vm1816 = vcmp.gt.f32.partialorder %v1702, 0.0
        %vm1817 = vcmp.gt.f32.partialorder %v1789, 0.0
        %vm1818 = vcmp.gt.f32.partialorder %v1791, 0.0
        %vm1819 = vcmp.gt.f32.partialorder %v1528, 0.0
        %vm1820 = vcmp.gt.f32.partialorder %v1530, 0.0
        %vm1821 = vcmp.gt.f32.partialorder %v1617, 0.0
        %vm1822 = vcmp.gt.f32.partialorder %v1619, 0.0
        %vm1823 = vcmp.gt.f32.partialorder %v1706, 0.0
        %vm1824 = vcmp.gt.f32.partialorder %v1708, 0.0
        %vm1825 = vcmp.gt.f32.partialorder %v1795, 0.0
        %vm1826 = vcmp.gt.f32.partialorder %v1797, 0.0
        %vm1827 = vcmp.gt.f32.partialorder %v1534, 0.0
        %vm1828 = vcmp.gt.f32.partialorder %v1536, 0.0
        %vm1829 = vcmp.gt.f32.partialorder %v1623, 0.0
        %vm1830 = vcmp.gt.f32.partialorder %v1625, 0.0
        %vm1831 = vcmp.gt.f32.partialorder %v1712, 0.0
        %vm1832 = vcmp.gt.f32.partialorder %v1714, 0.0
        %vm1833 = vcmp.gt.f32.partialorder %v1801, 0.0
        %vm1834 = vcmp.gt.f32.partialorder %v1803, 0.0
        %vm1835 = vcmp.gt.f32.partialorder %v1540, 0.0
        %vm1836 = vcmp.gt.f32.partialorder %v1542, 0.0
        %vm1837 = vcmp.gt.f32.partialorder %v1629, 0.0
        %vm1838 = vcmp.gt.f32.partialorder %v1631, 0.0
        %vm1839 = vcmp.gt.f32.partialorder %v1718, 0.0
        %vm1840 = vcmp.gt.f32.partialorder %v1720, 0.0
        %vm1841 = vcmp.gt.f32.partialorder %v1807, 0.0
        %vm1842 = vcmp.gt.f32.partialorder %v1809, 0.0
        %v1843 = vmul.f32 %v1522, 1.442695
        %v1844 = vpow.pop %v1843
        %v1845 = vmul.f32 %v1524, 1.442695
        %v1846 = vpow.pop %v1845
        %v1847 = vmul.f32 %v1611, 1.442695
        %v1848 = vpow.pop %v1847
        %v1849 = vmul.f32 %v1613, 1.442695
        %v1850 = vpow.pop %v1849
        %v1851 = vmul.f32 %v1700, 1.442695
        %v1852 = vpow.pop %v1851
        %v1853 = vmul.f32 %v1702, 1.442695
        %v1854 = vpow.pop %v1853
        %v1855 = vmul.f32 %v1789, 1.442695
        %v1856 = vpow.pop %v1855
        %v1857 = vmul.f32 %v1791, 1.442695
        %v1858 = vpow.pop %v1857
        %v1859 = vmul.f32 %v1528, 1.442695
        %v1860 = vpow.pop %v1859
        %v1861 = vmul.f32 %v1530, 1.442695
        %v1862 = vpow.pop %v1861
        %v1863 = vmul.f32 %v1617, 1.442695
        %v1864 = vpow.pop %v1863
        %v1865 = vmul.f32 %v1619, 1.442695
        %v1866 = vpow.pop %v1865
        %v1867 = vmul.f32 %v1706, 1.442695
        %v1868 = vpow.pop %v1867
        %v1869 = vmul.f32 %v1708, 1.442695
        %v1870 = vpow.pop %v1869
        %v1871 = vmul.f32 %v1795, 1.442695
        %v1872 = vpow.pop %v1871
        %v1873 = vmul.f32 %v1797, 1.442695
        %v1874 = vpow.pop %v1873
        %v1875 = vmul.f32 %v1534, 1.442695
        %v1876 = vpow.pop %v1875
        %v1877 = vmul.f32 %v1536, 1.442695
        %v1878 = vpow.pop %v1877
        %v1879 = vmul.f32 %v1623, 1.442695
        %v1880 = vpow.pop %v1879
        %v1881 = vmul.f32 %v1625, 1.442695
        %v1882 = vpow.pop %v1881
        %v1883 = vmul.f32 %v1712, 1.442695
        %v1884 = vpow.pop %v1883
        %v1885 = vmul.f32 %v1714, 1.442695
        %v1886 = vpow.pop %v1885
        %v1887 = vmul.f32 %v1801, 1.442695
        %v1888 = vpow.pop %v1887
        %v1889 = vmul.f32 %v1803, 1.442695
        %v1890 = vpow.pop %v1889
        %v1891 = vmul.f32 %v1540, 1.442695
        %v1892 = vpow.pop %v1891
        %v1893 = vmul.f32 %v1542, 1.442695
        %v1894 = vpow.pop %v1893
        %v1895 = vmul.f32 %v1629, 1.442695
        %v1896 = vpow.pop %v1895
        %v1897 = vmul.f32 %v1631, 1.442695
        %v1898 = vpow.pop %v1897
        %v1899 = vmul.f32 %v1718, 1.442695
        %v1900 = vpow.pop %v1899
        %v1901 = vmul.f32 %v1720, 1.442695
        %v1902 = vpow.pop %v1901
        %v1903 = vmul.f32 %v1807, 1.442695
        %v1904 = vpow.pop %v1903
        %v1905 = vmul.f32 %v1809, 1.442695
        %v1906 = vpow.pop %v1905
        %v1907 = vsub.f32 %v1844, 1.0
        %v1908 = vsub.f32 %v1846, 1.0
        %v1909 = vsub.f32 %v1848, 1.0
        %v1910 = vsub.f32 %v1850, 1.0
        %v1911 = vsub.f32 %v1852, 1.0
        %v1912 = vsub.f32 %v1854, 1.0
        %v1913 = vsub.f32 %v1856, 1.0
        %v1914 = vsub.f32 %v1858, 1.0
        %v1915 = vsub.f32 %v1860, 1.0
        %v1916 = vsub.f32 %v1862, 1.0
        %v1917 = vsub.f32 %v1864, 1.0
        %v1918 = vsub.f32 %v1866, 1.0
        %v1919 = vsub.f32 %v1868, 1.0
        %v1920 = vsub.f32 %v1870, 1.0
        %v1921 = vsub.f32 %v1872, 1.0
        %v1922 = vsub.f32 %v1874, 1.0
        %v1923 = vsub.f32 %v1876, 1.0
        %v1924 = vsub.f32 %v1878, 1.0
        %v1925 = vsub.f32 %v1880, 1.0
        %v1926 = vsub.f32 %v1882, 1.0
        %v1927 = vsub.f32 %v1884, 1.0
        %v1928 = vsub.f32 %v1886, 1.0
        %v1929 = vsub.f32 %v1888, 1.0
        %v1930 = vsub.f32 %v1890, 1.0
        %v1931 = vsub.f32 %v1892, 1.0
        %v1932 = vsub.f32 %v1894, 1.0
        %v1933 = vsub.f32 %v1896, 1.0
        %v1934 = vsub.f32 %v1898, 1.0
        %v1935 = vsub.f32 %v1900, 1.0
        %v1936 = vsub.f32 %v1902, 1.0
        %v1937 = vsub.f32 %v1904, 1.0
        %v1938 = vsub.f32 %v1906, 1.0
        %v1939 = vmul.f32 %v1907, 1.6732632
        %v1940 = vmul.f32 %v1908, 1.6732632
        %v1941 = vmul.f32 %v1909, 1.6732632
        %v1942 = vmul.f32 %v1910, 1.6732632
        %v1943 = vmul.f32 %v1911, 1.6732632
        %v1944 = vmul.f32 %v1912, 1.6732632
        %v1945 = vmul.f32 %v1913, 1.6732632
        %v1946 = vmul.f32 %v1914, 1.6732632
        %v1947 = vmul.f32 %v1915, 1.6732632
        %v1948 = vmul.f32 %v1916, 1.6732632
        %v1949 = vmul.f32 %v1917, 1.6732632
        %v1950 = vmul.f32 %v1918, 1.6732632
        %v1951 = vmul.f32 %v1919, 1.6732632
        %v1952 = vmul.f32 %v1920, 1.6732632
        %v1953 = vmul.f32 %v1921, 1.6732632
        %v1954 = vmul.f32 %v1922, 1.6732632
        %v1955 = vmul.f32 %v1923, 1.6732632
        %v1956 = vmul.f32 %v1924, 1.6732632
        %v1957 = vmul.f32 %v1925, 1.6732632
        %v1958 = vmul.f32 %v1926, 1.6732632
        %v1959 = vmul.f32 %v1927, 1.6732632
        %v1960 = vmul.f32 %v1928, 1.6732632
        %v1961 = vmul.f32 %v1929, 1.6732632
        %v1962 = vmul.f32 %v1930, 1.6732632
        %v1963 = vmul.f32 %v1931, 1.6732632
        %v1964 = vmul.f32 %v1932, 1.6732632
        %v1965 = vmul.f32 %v1933, 1.6732632
        %v1966 = vmul.f32 %v1934, 1.6732632
        %v1967 = vmul.f32 %v1935, 1.6732632
        %v1968 = vmul.f32 %v1936, 1.6732632
        %v1969 = vmul.f32 %v1937, 1.6732632
        %v1970 = vmul.f32 %v1938, 1.6732632
        %v1971 = vsel %vm1811, %v1522, %v1939
        %v1972 = vsel %vm1812, %v1524, %v1940
        %v1973 = vsel %vm1813, %v1611, %v1941
        %v1974 = vsel %vm1814, %v1613, %v1942
        %v1975 = vsel %vm1815, %v1700, %v1943
        %v1976 = vsel %vm1816, %v1702, %v1944
        %v1977 = vsel %vm1817, %v1789, %v1945
        %v1978 = vsel %vm1818, %v1791, %v1946
        %v1979 = vsel %vm1819, %v1528, %v1947
        %v1980 = vsel %vm1820, %v1530, %v1948
        %v1981 = vsel %vm1821, %v1617, %v1949
        %v1982 = vsel %vm1822, %v1619, %v1950
        %v1983 = vsel %vm1823, %v1706, %v1951
        %v1984 = vsel %vm1824, %v1708, %v1952
        %v1985 = vsel %vm1825, %v1795, %v1953
        %v1986 = vsel %vm1826, %v1797, %v1954
        %v1987 = vsel %vm1827, %v1534, %v1955
        %v1988 = vsel %vm1828, %v1536, %v1956
        %v1989 = vsel %vm1829, %v1623, %v1957
        %v1990 = vsel %vm1830, %v1625, %v1958
        %v1991 = vsel %vm1831, %v1712, %v1959
        %v1992 = vsel %vm1832, %v1714, %v1960
        %v1993 = vsel %vm1833, %v1801, %v1961
        %v1994 = vsel %vm1834, %v1803, %v1962
        %v1995 = vsel %vm1835, %v1540, %v1963
        %v1996 = vsel %vm1836, %v1542, %v1964
        %v1997 = vsel %vm1837, %v1629, %v1965
        %v1998 = vsel %vm1838, %v1631, %v1966
        %v1999 = vsel %vm1839, %v1718, %v1967
        %v2000 = vsel %vm1840, %v1720, %v1968
        %v2001 = vsel %vm1841, %v1807, %v1969
        %v2002 = vsel %vm1842, %v1809, %v1970
        %v2003 = vmul.f32 %v1971, 1.050701
        %v2004 = vmul.f32 %v1972, 1.050701
        %v2005 = vmul.f32 %v1973, 1.050701
        %v2006 = vmul.f32 %v1974, 1.050701
        %v2007 = vmul.f32 %v1975, 1.050701
        %v2008 = vmul.f32 %v1976, 1.050701
        %v2009 = vmul.f32 %v1977, 1.050701
        %v2010 = vmul.f32 %v1978, 1.050701
        %v2011 = vmul.f32 %v1979, 1.050701
        %v2012 = vmul.f32 %v1980, 1.050701
        %v2013 = vmul.f32 %v1981, 1.050701
        %v2014 = vmul.f32 %v1982, 1.050701
        %v2015 = vmul.f32 %v1983, 1.050701
        %v2016 = vmul.f32 %v1984, 1.050701
        %v2017 = vmul.f32 %v1985, 1.050701
        %v2018 = vmul.f32 %v1986, 1.050701
        %v2019 = vmul.f32 %v1987, 1.050701
        %v2020 = vmul.f32 %v1988, 1.050701
        %v2021 = vmul.f32 %v1989, 1.050701
        %v2022 = vmul.f32 %v1990, 1.050701
        %v2023 = vmul.f32 %v1991, 1.050701
        %v2024 = vmul.f32 %v1992, 1.050701
        %v2025 = vmul.f32 %v1993, 1.050701
        %v2026 = vmul.f32 %v1994, 1.050701
        %v2027 = vmul.f32 %v1995, 1.050701
        %v2028 = vmul.f32 %v1996, 1.050701
        %v2029 = vmul.f32 %v1997, 1.050701
        %v2030 = vmul.f32 %v1998, 1.050701
        %v2031 = vmul.f32 %v1999, 1.050701
        %v2032 = vmul.f32 %v2000, 1.050701
        %v2033 = vmul.f32 %v2001, 1.050701
        %v2034 = vmul.f32 %v2002, 1.050701
        %v2035 = vld [vmem:[%s5] sm:$0xff]
        %v2036 = vld [vmem:[%s5 + $0x8] sm:$0xff]
        %v2037 = vld [vmem:[%s5 + $0x10] sm:$0xff]
        %v2038 = vld [vmem:[%s5 + $0x18] sm:$0xff]
        %v2039 = vld [vmem:[#allocation2] sm:$0x1]
        %2041 = vset.pattern.permute.xlu0 0
        %2042 = vperm.xlu0 %2041, %v2035
        %v2043 = vpop.permute.xlu0 %2042
        %2046 = vset.pattern.permute.xlu0 0
        %2047 = vperm.xlu0 %2046, %v2036
        %v2048 = vpop.permute.xlu0 %2047
        %2051 = vset.pattern.permute.xlu0 0
        %2052 = vperm.xlu0 %2051, %v2037
        %v2053 = vpop.permute.xlu0 %2052
        %2056 = vset.pattern.permute.xlu0 0
        %2057 = vperm.xlu0 %2056, %v2038
        %v2058 = vpop.permute.xlu0 %2057
        %v2060 = vmul.f32 %v2003, %v2043
        %v2061 = vmul.f32 %v2004, %v2043
        %v2062 = vmul.f32 %v2005, %v2043
        %v2063 = vmul.f32 %v2006, %v2043
        %v2064 = vmul.f32 %v2007, %v2043
        %v2065 = vmul.f32 %v2008, %v2043
        %v2066 = vmul.f32 %v2009, %v2043
        %v2067 = vmul.f32 %v2010, %v2043
        %v2068 = vmul.f32 %v2011, %v2048
        %v2069 = vmul.f32 %v2012, %v2048
        %v2070 = vmul.f32 %v2013, %v2048
        %v2071 = vmul.f32 %v2014, %v2048
        %v2072 = vmul.f32 %v2015, %v2048
        %v2073 = vmul.f32 %v2016, %v2048
        %v2074 = vmul.f32 %v2017, %v2048
        %v2075 = vmul.f32 %v2018, %v2048
        %v2076 = vmul.f32 %v2019, %v2053
        %v2077 = vmul.f32 %v2020, %v2053
        %v2078 = vmul.f32 %v2021, %v2053
        %v2079 = vmul.f32 %v2022, %v2053
        %v2080 = vmul.f32 %v2023, %v2053
        %v2081 = vmul.f32 %v2024, %v2053
        %v2082 = vmul.f32 %v2025, %v2053
        %v2083 = vmul.f32 %v2026, %v2053
        %v2084 = vmul.f32 %v2027, %v2058
        %v2085 = vmul.f32 %v2028, %v2058
        %v2086 = vmul.f32 %v2029, %v2058
        %v2087 = vmul.f32 %v2030, %v2058
        %v2088 = vmul.f32 %v2031, %v2058
        %v2089 = vmul.f32 %v2032, %v2058
        %v2090 = vmul.f32 %v2033, %v2058
        %v2091 = vmul.f32 %v2034, %v2058
        %v2092 = vadd.f32 %v2060, %v2068
        %v2093 = vadd.f32 %v2092, %v2076
        %v2094 = vadd.f32 %v2093, %v2084
        %v2095 = vrot.slane %v2094, 4
        %v2096 = vadd.f32 %v2094, %v2095
        %v2097 = vrot.slane %v2096, 2
        %v2098 = vadd.f32 %v2096, %v2097
        %v2099 = vrot.slane %v2098, 1
        %v2100 = vadd.f32 %v2098, %v2099
        %v2101 = vadd.f32 %v2061, %v2069
        %v2102 = vadd.f32 %v2101, %v2077
        %v2103 = vadd.f32 %v2102, %v2085
        %v2104 = vrot.slane %v2103, 4
        %v2105 = vadd.f32 %v2103, %v2104
        %v2106 = vrot.slane %v2105, 2
        %v2107 = vadd.f32 %v2105, %v2106
        %v2108 = vrot.slane %v2107, 1
        %v2109 = vadd.f32 %v2107, %v2108
        %v2110 = vadd.f32 %v2062, %v2070
        %v2111 = vadd.f32 %v2110, %v2078
        %v2112 = vadd.f32 %v2111, %v2086
        %v2113 = vrot.slane %v2112, 4
        %v2114 = vadd.f32 %v2112, %v2113
        %v2115 = vrot.slane %v2114, 2
        %v2116 = vadd.f32 %v2114, %v2115
        %v2117 = vrot.slane %v2116, 1
        %v2118 = vadd.f32 %v2116, %v2117
        %v2119 = vadd.f32 %v2063, %v2071
        %v2120 = vadd.f32 %v2119, %v2079
        %v2121 = vadd.f32 %v2120, %v2087
        %v2122 = vrot.slane %v2121, 4
        %v2123 = vadd.f32 %v2121, %v2122
        %v2124 = vrot.slane %v2123, 2
        %v2125 = vadd.f32 %v2123, %v2124
        %v2126 = vrot.slane %v2125, 1
        %v2127 = vadd.f32 %v2125, %v2126
        %v2128 = vadd.f32 %v2064, %v2072
        %v2129 = vadd.f32 %v2128, %v2080
        %v2130 = vadd.f32 %v2129, %v2088
        %v2131 = vrot.slane %v2130, 4
        %v2132 = vadd.f32 %v2130, %v2131
        %v2133 = vrot.slane %v2132, 2
        %v2134 = vadd.f32 %v2132, %v2133
        %v2135 = vrot.slane %v2134, 1
        %v2136 = vadd.f32 %v2134, %v2135
        %v2137 = vadd.f32 %v2065, %v2073
        %v2138 = vadd.f32 %v2137, %v2081
        %v2139 = vadd.f32 %v2138, %v2089
        %v2140 = vrot.slane %v2139, 4
        %v2141 = vadd.f32 %v2139, %v2140
        %v2142 = vrot.slane %v2141, 2
        %v2143 = vadd.f32 %v2141, %v2142
        %v2144 = vrot.slane %v2143, 1
        %v2145 = vadd.f32 %v2143, %v2144
        %v2146 = vadd.f32 %v2066, %v2074
        %v2147 = vadd.f32 %v2146, %v2082
        %v2148 = vadd.f32 %v2147, %v2090
        %v2149 = vrot.slane %v2148, 4
        %v2150 = vadd.f32 %v2148, %v2149
        %v2151 = vrot.slane %v2150, 2
        %v2152 = vadd.f32 %v2150, %v2151
        %v2153 = vrot.slane %v2152, 1
        %v2154 = vadd.f32 %v2152, %v2153
        %v2155 = vadd.f32 %v2067, %v2075
        %v2156 = vadd.f32 %v2155, %v2083
        %v2157 = vadd.f32 %v2156, %v2091
        %v2158 = vrot.slane %v2157, 4
        %v2159 = vadd.f32 %v2157, %v2158
        %v2160 = vrot.slane %v2159, 2
        %v2161 = vadd.f32 %v2159, %v2160
        %v2162 = vrot.slane %v2161, 1
        %v2163 = vadd.f32 %v2161, %v2162
        %2165 = vset.pattern.permute.xlu0 0
        %2166 = vperm.xlu0 %2165, %v2039
        %v2167 = vpop.permute.xlu0 %2166
        %v2169 = vlaneseq
        %v2170 = vshrl.u32 %v2169, 7
        %v2171 = vsub.s32 0, %v2170
        %v2172 = vrot.slane %v2167, %v2171
        %v2173 = vadd.f32 %v2100, %v2172
        %v2174 = vadd.f32 %v2109, %v2172
        %v2175 = vadd.f32 %v2118, %v2172
        %v2176 = vadd.f32 %v2127, %v2172
        %v2177 = vadd.f32 %v2136, %v2172
        %v2178 = vadd.f32 %v2145, %v2172
        %v2179 = vadd.f32 %v2154, %v2172
        %v2180 = vadd.f32 %v2163, %v2172
        %v2189 = vcombine.low %v2173, %v2174
        %v2190 = vcombine.low %v2175, %v2176
        %v2191 = vcombine.low %v2177, %v2178
        %v2192 = vcombine.low %v2179, %v2180
        %v2194 = vunpack.c.l.s4 1966171168
        %v2195 = vunpack.c.0.s8 %v2194
        %v2196 = vlaneseq
        %v2197 = vshrl.u32 %v2196, 7
        %v2198 = vsub.s32 %v2195, %v2197
        %v2199 = vrot.slane %v2189, %v2198
        %v2201 = vunpack.c.l.s4 1966171168
        %v2202 = vunpack.c.0.s8 %v2201
        %v2203 = vlaneseq
        %v2204 = vshrl.u32 %v2203, 7
        %v2205 = vsub.s32 %v2202, %v2204
        %v2206 = vrot.slane %v2190, %v2205
        %v2208 = vunpack.c.l.s4 1966171168
        %v2209 = vunpack.c.0.s8 %v2208
        %v2210 = vlaneseq
        %v2211 = vshrl.u32 %v2210, 7
        %v2212 = vsub.s32 %v2209, %v2211
        %v2213 = vrot.slane %v2191, %v2212
        %v2215 = vunpack.c.l.s4 1966171168
        %v2216 = vunpack.c.0.s8 %v2215
        %v2217 = vlaneseq
        %v2218 = vshrl.u32 %v2217, 7
        %v2219 = vsub.s32 %v2216, %v2218
        %v2220 = vrot.slane %v2192, %v2219
        %v2221 = vcombine.low %v2199, %v2206
        %v2222 = vcombine.low %v2213, %v2220
        %v2224 = vunpack.c.l.s4 1966171168
        %v2225 = vunpack.c.0.s8 %v2224
        %v2226 = vlaneseq
        %v2227 = vshrl.u32 %v2226, 7
        %v2228 = vsub.s32 %v2225, %v2227
        %v2229 = vrot.slane %v2221, %v2228
        %v2231 = vunpack.c.l.s4 1966171168
        %v2232 = vunpack.c.0.s8 %v2231
        %v2233 = vlaneseq
        %v2234 = vshrl.u32 %v2233, 7
        %v2235 = vsub.s32 %v2232, %v2234
        %v2236 = vrot.slane %v2222, %v2235
        %v2237 = vcombine.low %v2229, %v2236
        %2239 = vst [vmem:[%s274] sm:$0xff] %v2237
        %s2240 = sand.u32 %s183, 1
        %s2241 = scalar_lea.sflag [#allocation4], %s2240
        %s2242 = sand.u32 %s183, 1
        %s2243 = smul.addr %s2242, 8
        %s2244 = scalar_lea.vmem [#allocation3], %s2243
        // Predicated region
        $region49: #{tpu_custom_call.1} parent=47 // pred_check
          %p2245 = pneg %p193
        $region50: #{tpu_custom_call.1} parent=47 // pred_check_branch
          %2247 = sbr.rel (%p2245) target = $region52
        $region51: #{tpu_custom_call.1} parent=47 // pred_region
          %s2249 = ssub.s32 128, 128
          %2250 = vsyncadd %s2241, %s2249
          %s2251 = smul.addr %s23, 8
          %s2252 = smul.addr %s2251, 16
          %s2253 = scalar_lea.hbm %s7, %s2252
          %s2255 = sshll.u32 %s2244, 4
          %s2256 = int_to_ptr.vmem [resolvable:$true] %s2255
          %2258 = dma.vmem_to_hbm [thread:$0]  %s2256, 128, %s2253, %s2241
        $region52: #{tpu_custom_call.1} parent=47 // pred_fallthru
          _
      $region48: #{tpu_custom_call.1} parent=5 // pred_fallthru
        _
      %p2259 = scmp.le.s32.totalorder 2, %s18
      // Predicated region
      $region53: #{tpu_custom_call.1} parent=5 // pred_check
        %p2260 = pneg %p2259
      $region54: #{tpu_custom_call.1} parent=5 // pred_check_branch
        %2262 = sbr.rel (%p2260) target = $region56
      $region55: #{tpu_custom_call.1} parent=5 // pred_region
        %s2263 = ssub.s32 %s18, 2
        // Predicated region
        $region57: #{tpu_custom_call.1} parent=55 // pred_check
          %p2264 = pneg %p199
        $region58: #{tpu_custom_call.1} parent=55 // pred_check_branch
          %2266 = sbr.rel (%p2264) target = $region60
        $region59: #{tpu_custom_call.1} parent=55 // pred_region
          %s2267 = sand.u32 %s184, 1
          %s2268 = scalar_lea.sflag [#allocation4], %s2267
          %s2269 = sand.u32 %s184, 1
          %s2270 = smul.addr %s2269, 8
          %s2271 = scalar_lea.vmem [#allocation3], %s2270
          %2272 = dma.done %s2268, 128
        $region60: #{tpu_custom_call.1} parent=55 // pred_fallthru
          _
      $region56: #{tpu_custom_call.1} parent=5 // pred_fallthru
        _
    $region6: #{tpu_custom_call.1} parent=1 // loop_footer
      %s22 = sadd.s32 1, %s18
    $region7: #{tpu_custom_call.1} parent=1 // loop_footer_branch
      %17 = sbr.rel target = $region3
    $region8: #{tpu_custom_call.1} parent=1 // loop_exit
      _
    %2273 = vsyncpa [#allocation4], 1
    %s2274 = scalar_lea.sflag [#allocation4], 1
    %2275 = vsyncpa %s2274, 1

</llo_original>
